<compile_context>
chip_gen: v5e
topology: v5e:2x2
jax: 0.10.0
libtpu: 0.0.40
codegen_flags: <defaults>
</compile_context>

<pallas_src>
import math
import jax
import jax.numpy as jnp
from jax.experimental import pallas as pl
from jax.experimental.pallas import tpu as pltpu

_LANE = 128
_SUBLANE = 8
_NEG_BIG = -1e30


def _round_up(x, m):
    return ((x + m - 1) // m) * m


# --------------------------------------------------------------------------- #
# kernel
# --------------------------------------------------------------------------- #
def _mlp_kernel(x_ref, w_ref, b_ref, o_ref, acc_ref):
    # grid = (row_tiles, k_tiles); K (reduction) axis is last / "arbitrary".
    # x_ref: (TM, TK) bf16   w_ref: (TK, Np) bf16   b_ref: (1, Np) f32
    # o_ref: (TM, Np) f32    acc_ref: (TM, Np) f32 scratch
    k = pl.program_id(1)

    @pl.when(k == 0)
    def _():
        acc_ref[...] = jnp.zeros_like(acc_ref)

    acc_ref[...] += jnp.dot(x_ref[...], w_ref[...],
                            preferred_element_type=jnp.float32)

    @pl.when(k == pl.num_programs(1) - 1)
    def _():
        # bias add + row-wise softmax over the lane-dense hidden axis.
        # Padded columns carry a -1e30 bias (and zero W columns), so their
        # exp(...) underflows to exactly 0.
        logits = acc_ref[...] + b_ref[...]
        m = jnp.max(logits, axis=-1, keepdims=True)
        e = jnp.exp(logits - m)
        denom = jnp.sum(e, axis=-1, keepdims=True)
        # exact reciprocal: denom is only (TM, 1), cost negligible, rows sum to 1
        o_ref[...] = (e / denom).astype(o_ref.dtype)


# --------------------------------------------------------------------------- #
# planning (generation-aware VMEM budget + tile selection)
# --------------------------------------------------------------------------- #
def _vmem_plan():
    """Returns (tile-search budget bytes, vmem_limit_bytes for CompilerParams)."""
    phys = None
    try:
        info = pltpu.get_tpu_info()
        for attr in ("vmem_capacity_bytes", "vmem_capacity", "vmem_bytes"):
            phys = getattr(info, attr, None)
            if phys:
                break
    except Exception:
        phys = None
    if phys and phys <= 80 * 1024 * 1024:
        # v7x-class: 64 MiB physical per TensorCore -> keep headroom below it
        return 40 * 1024 * 1024, 48 * 1024 * 1024
    if phys:
        # v5e / v6e-class: 128 MiB physical
        return 56 * 1024 * 1024, 64 * 1024 * 1024
    # unknown generation: conservative but still above the default scoped limit
    return 24 * 1024 * 1024, 32 * 1024 * 1024


def _plan_tiles(n_nodes, n_embed, n_hidden_p, vmem_budget):
    """Choose (tm, tk, kt).  tk == n_embed (resident, single-buffered W) unless
    the full W tile alone busts the budget, in which case K is split into
    lane-aligned chunks (W then streamed / double-buffered along K)."""

    def step_bytes(tm, tk, w_bufs):
        x = 2 * tm * tk * 2                 # bf16 x tile, double-buffered
        o = 2 * tm * n_hidden_p * 4         # f32 out tile, double-buffered
        w = w_bufs * tk * n_hidden_p * 2    # bf16 W tile
        b = 1 * n_hidden_p * 4              # f32 bias (constant, single buffer)
        acc = tm * n_hidden_p * 4           # f32 accumulator scratch
        return x + o + w + b + acc

    tk, kt, w_bufs = n_embed, 1, 1
    if n_embed > _LANE and step_bytes(128, n_embed, 1) > vmem_budget:
        tk, w_bufs = _LANE, 2
        while tk * 2 < n_embed and step_bytes(128, tk * 2, 2) <= vmem_budget:
            tk *= 2
        kt = -(-n_embed // tk)  # cdiv

    # Row tile: largest multiple-of-8 (<= 1024) that fits, capped at ~n_nodes/2
    # so the "parallel" row axis has >= 2 grid steps (v7x megacore sharding).
    tm_cap = min(1024, max(_SUBLANE, ((n_nodes // 2) // _SUBLANE) * _SUBLANE))
    tm = tm_cap
    while tm > _SUBLANE and step_bytes(tm, tk, w_bufs) > vmem_budget:
        tm = max(_SUBLANE, ((tm // 2) // _SUBLANE) * _SUBLANE)
    return tm, tk, kt


# --------------------------------------------------------------------------- #
# wrapper
# --------------------------------------------------------------------------- #
def prepare_mlp_params(emb_weight, fc1_weight, fc1_bias):
    """One-time layout prep (hoisted off the per-call path):
       - bf16 cast of x and W, W transposed to (K, N)
       - hidden axis padded to a multiple of 128 (zero W cols, -1e30 bias)
       - K axis zero-padded to tk*kt when a K-split is needed
       Returns a dict consumed by mlp_forward_prepared."""
    emb_weight = jnp.asarray(emb_weight)
    fc1_weight = jnp.asarray(fc1_weight)
    fc1_bias = jnp.asarray(fc1_bias)

    n_nodes, n_embed = emb_weight.shape
    n_hidden = fc1_weight.shape[0]
    n_hidden_p = _round_up(n_hidden, _LANE)

    budget, vmem_limit = _vmem_plan()
    tm, tk, kt = _plan_tiles(n_nodes, n_embed, n_hidden_p, budget)
    k_p = tk * kt  # padded contraction length (== n_embed when kt == 1)

    w_t = fc1_weight.T.astype(jnp.bfloat16)  # (n_embed, n_hidden)
    w_t = jnp.pad(w_t, ((0, k_p - n_embed), (0, n_hidden_p - n_hidden)))
    b_p = jnp.pad(fc1_bias.astype(jnp.float32), (0, n_hidden_p - n_hidden),
                  constant_values=_NEG_BIG).reshape(1, n_hidden_p)
    x = emb_weight.astype(jnp.bfloat16)
    if k_p != n_embed:
        x = jnp.pad(x, ((0, 0), (0, k_p - n_embed)))

    return dict(x=x, w=w_t, b=b_p,
                n_nodes=n_nodes, n_hidden=n_hidden, n_hidden_p=n_hidden_p,
                tm=tm, tk=tk, kt=kt, vmem_limit=vmem_limit)


def mlp_forward_prepared(prep):
    tm, tk, kt = prep["tm"], prep["tk"], prep["kt"]
    n_nodes, n_hidden_p = prep["n_nodes"], prep["n_hidden_p"]
    rows = pl.cdiv(n_nodes, tm)  # partial last row block handled by Pallas

    def call(single_buffer_consts):
        const_kw = ({"pipeline_mode": pl.Buffered(1)}
                    if single_buffer_consts else {})
        if kt == 1:
            # constant index_map: W resident, single buffer
            w_spec = pl.BlockSpec((tk, n_hidden_p), lambda i, k: (0, 0), **const_kw)
        else:
            # streamed along K: normal double buffering
            w_spec = pl.BlockSpec((tk, n_hidden_p), lambda i, k: (k, 0))
        b_spec = pl.BlockSpec((1, n_hidden_p), lambda i, k: (0, 0), **const_kw)

        return pl.pallas_call(
            _mlp_kernel,
            out_shape=jax.ShapeDtypeStruct((n_nodes, n_hidden_p), jnp.float32),
            grid_spec=pltpu.PrefetchScalarGridSpec(
                num_scalar_prefetch=0,
                grid=(rows, kt),
                in_specs=[
                    pl.BlockSpec((tm, tk), lambda i, k: (i, k)),   # x rows
                    w_spec,                                        # W tile
                    b_spec,                                        # bias
                ],
                out_specs=pl.BlockSpec((tm, n_hidden_p), lambda i, k: (i, 0)),
                scratch_shapes=[pltpu.VMEM((tm, n_hidden_p), jnp.float32)],
            ),
            compiler_params=pltpu.CompilerParams(
                dimension_semantics=("parallel", "arbitrary"),
                vmem_limit_bytes=prep["vmem_limit"]),
        )(prep["x"], prep["w"], prep["b"])

    try:
        out_p = call(True)
    except Exception:
        # pl.Buffered(1) not accepted by this jax version -> default buffering
        out_p = call(False)

    # drop the lane padding to match the module's (n_nodes, n_hidden) output.
    # TODO(synk): if the consumer tolerates the padded/bf16 layout, skip this
    # slice (and emit bf16) to save a full extra pass over the output.
    return out_p[:, :prep["n_hidden"]]


def mlp_forward(emb_weight, fc1_weight, fc1_bias):
    """One-shot convenience wrapper. For repeated calls, use
    prepare_mlp_params() once and mlp_forward_prepared() per call."""
    return mlp_forward_prepared(prepare_mlp_params(emb_weight, fc1_weight, fc1_bias))


def init_params(key, n_nodes, n_embed, n_hidden):
    """Deterministic init matching nn.Embedding / nn.Linear defaults."""
    k_emb, k_w, k_b = jax.random.split(key, 3)
    emb_weight = jax.random.normal(k_emb, (n_nodes, n_embed), dtype=jnp.float32)
    bound = 1.0 / math.sqrt(n_embed)
    fc1_weight = jax.random.uniform(k_w, (n_hidden, n_embed),
                                    minval=-bound, maxval=bound,
                                    dtype=jnp.float32)
    fc1_bias = jax.random.uniform(k_b, (n_hidden,),
                                  minval=-bound, maxval=bound,
                                  dtype=jnp.float32)
    return emb_weight, fc1_weight, fc1_bias


if __name__ == "__main__":
    # small shapes consistent with the module: n_nodes=256, n_embed=32, n_hidden=64
    # (at these shapes the kernel is launch/DMA-latency bound; tiling choices
    #  matter only at realistic sizes)
    n_nodes, n_embed, n_hidden = 256, 32, 64
    key = jax.random.PRNGKey(0)
    emb_weight, fc1_weight, fc1_bias = init_params(key, n_nodes, n_embed, n_hidden)

    # prop_edge_index / args are unused by the forward pass (kept for parity)
    prop_edge_index = jnp.zeros((2, 8), dtype=jnp.int32)
    args = None

    prep = prepare_mlp_params(emb_weight, fc1_weight, fc1_bias)   # hoisted prep
    out = mlp_forward_prepared(prep)
    out = jax.block_until_ready(out)

    # reference check in plain JAX (f32); bf16 matmul inputs introduce small
    # (<~1e-3 abs) deviations in the softmax output.
    ref = jax.nn.softmax(emb_weight @ fc1_weight.T + fc1_bias, axis=1)
    assert out.shape == (n_nodes, n_hidden)
    assert jnp.allclose(out, ref, atol=2e-3, rtol=1e-3)
    assert jnp.allclose(jnp.sum(out, axis=1), 1.0, atol=1e-4)

    print("KERNEL_OK")
</pallas_src>

<mosaic_0001>
module attributes {stable_mosaic.version = 11 : i64} {
  func.func @_mlp_kernel(%arg0: i32, %arg1: i32, %arg2: memref<128x32xbf16, #tpu.memory_space<vmem>>, %arg3: memref<32x128xbf16, #tpu.memory_space<vmem>>, %arg4: memref<1x128xf32, #tpu.memory_space<vmem>>, %arg5: memref<128x128xf32, #tpu.memory_space<vmem>>, %arg6: memref<128x128xf32, #tpu.memory_space<vmem>>) attributes {dimension_semantics = [#tpu.dimension_semantics<parallel>, #tpu.dimension_semantics<arbitrary>], iteration_bounds = array<i64: 2, 1>, scalar_prefetch = 0 : i64, scratch_operands = 1 : i64, tpu.core_type = #tpu.core_type<tc>, window_params = [{transform_indices = @transform_0, window_bounds = array<i64: 128, 32>}, {pipeline_mode = #tpu.pipeline_mode<synchronous>, transform_indices = @transform_1, window_bounds = array<i64: 32, 128>}, {pipeline_mode = #tpu.pipeline_mode<synchronous>, transform_indices = @transform_2, window_bounds = array<i64: 1, 128>}, {transform_indices = @transform_3, window_bounds = array<i64: 128, 128>}]} {
    %c0_i32 = arith.constant 0 : i32
    %0 = arith.cmpi eq, %arg1, %c0_i32 : i32
    %1 = arith.extui %0 : i1 to i32
    %c0_i32_0 = arith.constant 0 : i32
    %2 = arith.cmpi ne, %1, %c0_i32_0 : i32
    scf.if %2 {
      %cst_10 = arith.constant 0.000000e+00 : f32
      %12 = vector.broadcast %cst_10 : f32 to vector<128x128xf32>
      %c0_11 = arith.constant 0 : index
      %c0_12 = arith.constant 0 : index
      %13 = vector.load %arg6[%c0_11, %c0_12] : memref<128x128xf32, #tpu.memory_space<vmem>>, vector<128x128xf32>
      tpu.vector_store %arg6[%c0_11, %c0_12], %12 {strides = array<i32>} : memref<128x128xf32, #tpu.memory_space<vmem>>, vector<128x128xf32>,
    } else {
    }
    %c0 = arith.constant 0 : index
    %c0_1 = arith.constant 0 : index
    %3 = vector.load %arg6[%c0, %c0_1] : memref<128x128xf32, #tpu.memory_space<vmem>>, vector<128x128xf32>
    %c0_2 = arith.constant 0 : index
    %c0_3 = arith.constant 0 : index
    %4 = vector.load %arg2[%c0_2, %c0_3] : memref<128x32xbf16, #tpu.memory_space<vmem>>, vector<128x32xbf16>
    %c0_4 = arith.constant 0 : index
    %c0_5 = arith.constant 0 : index
    %5 = vector.load %arg3[%c0_4, %c0_5] : memref<32x128xbf16, #tpu.memory_space<vmem>>, vector<32x128xbf16>
    %cst = arith.constant dense<0.000000e+00> : vector<128x128xf32>
    %6 = tpu.matmul %4, %5, %cst {dimension_numbers = #tpu.dot_dimension_numbers<[1], [0], [0], [1], [0, 0, 1, 1], [], []>} : vector<128x32xbf16>, vector<32x128xbf16>, vector<128x128xf32> -> vector<128x128xf32>
    %7 = arith.addf %3, %6 : vector<128x128xf32>
    %c0_6 = arith.constant 0 : index
    %c0_7 = arith.constant 0 : index
    %8 = vector.load %arg6[%c0_6, %c0_7] : memref<128x128xf32, #tpu.memory_space<vmem>>, vector<128x128xf32>
    tpu.vector_store %arg6[%c0_6, %c0_7], %7 {strides = array<i32>} : memref<128x128xf32, #tpu.memory_space<vmem>>, vector<128x128xf32>,
    %c0_i32_8 = arith.constant 0 : i32
    %9 = arith.cmpi eq, %arg1, %c0_i32_8 : i32
    %10 = arith.extui %9 : i1 to i32
    %c0_i32_9 = arith.constant 0 : i32
    %11 = arith.cmpi ne, %10, %c0_i32_9 : i32
    scf.if %11 {
      %c0_10 = arith.constant 0 : index
      %c0_11 = arith.constant 0 : index
      %12 = vector.load %arg6[%c0_10, %c0_11] : memref<128x128xf32, #tpu.memory_space<vmem>>, vector<128x128xf32>
      %c0_12 = arith.constant 0 : index
      %c0_13 = arith.constant 0 : index
      %13 = vector.load %arg4[%c0_12, %c0_13] : memref<1x128xf32, #tpu.memory_space<vmem>>, vector<1x128xf32>
      %14 = vector.broadcast %13 : vector<1x128xf32> to vector<128x128xf32>
      %15 = arith.addf %12, %14 : vector<128x128xf32>
      %cst_14 = arith.constant dense<0xFF800000> : vector<128xf32>
      %16 = vector.multi_reduction <maximumf>, %15, %cst_14 [1] : vector<128x128xf32> to vector<128xf32>
      %17 = vector.shape_cast %16 : vector<128xf32> to vector<128x1xf32>
      %18 = vector.broadcast %17 : vector<128x1xf32> to vector<128x128xf32>
      %19 = arith.subf %15, %18 : vector<128x128xf32>
      %20 = math.exp %19 : vector<128x128xf32>
      %cst_15 = arith.constant dense<0.000000e+00> : vector<128xf32>
      %21 = vector.multi_reduction <add>, %20, %cst_15 [1] : vector<128x128xf32> to vector<128xf32>
      %22 = vector.shape_cast %21 : vector<128xf32> to vector<128x1xf32>
      %23 = vector.broadcast %22 : vector<128x1xf32> to vector<128x128xf32>
      %24 = arith.divf %20, %23 : vector<128x128xf32>
      %c0_16 = arith.constant 0 : index
      %c0_17 = arith.constant 0 : index
      %25 = vector.load %arg5[%c0_16, %c0_17] : memref<128x128xf32, #tpu.memory_space<vmem>>, vector<128x128xf32>
      tpu.vector_store %arg5[%c0_16, %c0_17], %24 {strides = array<i32>} : memref<128x128xf32, #tpu.memory_space<vmem>>, vector<128x128xf32>,
    } else {
    }
    return
  }
  func.func @transform_0(%arg0: i32, %arg1: i32) -> (i32, i32) {
    %c0_i32 = arith.constant 0 : i32
    return %arg0, %arg1 : i32, i32
  }
  func.func @transform_1(%arg0: i32, %arg1: i32) -> (i32, i32) {
    %c0_i32 = arith.constant 0 : i32
    %c0_i32_0 = arith.constant 0 : i32
    %c0_i32_1 = arith.constant 0 : i32
    return %c0_i32, %c0_i32_0 : i32, i32
  }
  func.func @transform_2(%arg0: i32, %arg1: i32) -> (i32, i32) {
    %c0_i32 = arith.constant 0 : i32
    %c0_i32_0 = arith.constant 0 : i32
    %c0_i32_1 = arith.constant 0 : i32
    return %c0_i32, %c0_i32_0 : i32, i32
  }
  func.func @transform_3(%arg0: i32, %arg1: i32) -> (i32, i32) {
    %c0_i32 = arith.constant 0 : i32
    %c0_i32_0 = arith.constant 0 : i32
    return %arg0, %c0_i32 : i32, i32
  }
}

module attributes {stable_mosaic.version = 11 : i64} {
  func.func @_mlp_kernel(%arg0: i32, %arg1: i32, %arg2: memref<128x32xbf16, #tpu.memory_space<vmem>>, %arg3: memref<32x128xbf16, #tpu.memory_space<vmem>>, %arg4: memref<1x128xf32, #tpu.memory_space<vmem>>, %arg5: memref<128x128xf32, #tpu.memory_space<vmem>>, %arg6: memref<128x128xf32, #tpu.memory_space<vmem>>) attributes {dimension_semantics = [#tpu.dimension_semantics<parallel>, #tpu.dimension_semantics<arbitrary>], iteration_bounds = array<i64: 2, 1>, scalar_prefetch = 0 : i64, scratch_operands = 1 : i64, tpu.core_type = #tpu.core_type<tc>, window_params = [{transform_indices = @transform_0, window_bounds = array<i64: 128, 32>}, {pipeline_mode = #tpu.pipeline_mode<synchronous>, transform_indices = @transform_1, window_bounds = array<i64: 32, 128>}, {pipeline_mode = #tpu.pipeline_mode<synchronous>, transform_indices = @transform_2, window_bounds = array<i64: 1, 128>}, {transform_indices = @transform_3, window_bounds = array<i64: 128, 128>}]} {
    %c0_i32 = arith.constant 0 : i32
    %0 = arith.cmpi eq, %arg1, %c0_i32 : i32
    %1 = arith.extui %0 : i1 to i32
    %c0_i32_0 = arith.constant 0 : i32
    %2 = arith.cmpi ne, %1, %c0_i32_0 : i32
    scf.if %2 {
      %cst_10 = arith.constant 0.000000e+00 : f32
      %12 = vector.broadcast %cst_10 : f32 to vector<128x128xf32>
      %c0_11 = arith.constant 0 : index
      %c0_12 = arith.constant 0 : index
      %13 = vector.load %arg6[%c0_11, %c0_12] : memref<128x128xf32, #tpu.memory_space<vmem>>, vector<128x128xf32>
      tpu.vector_store %arg6[%c0_11, %c0_12], %12 {strides = array<i32>} : memref<128x128xf32, #tpu.memory_space<vmem>>, vector<128x128xf32>,
    } else {
    }
    %c0 = arith.constant 0 : index
    %c0_1 = arith.constant 0 : index
    %3 = vector.load %arg6[%c0, %c0_1] : memref<128x128xf32, #tpu.memory_space<vmem>>, vector<128x128xf32>
    %c0_2 = arith.constant 0 : index
    %c0_3 = arith.constant 0 : index
    %4 = vector.load %arg2[%c0_2, %c0_3] : memref<128x32xbf16, #tpu.memory_space<vmem>>, vector<128x32xbf16>
    %c0_4 = arith.constant 0 : index
    %c0_5 = arith.constant 0 : index
    %5 = vector.load %arg3[%c0_4, %c0_5] : memref<32x128xbf16, #tpu.memory_space<vmem>>, vector<32x128xbf16>
    %cst = arith.constant dense<0.000000e+00> : vector<128x128xf32>
    %6 = tpu.matmul %4, %5, %cst {dimension_numbers = #tpu.dot_dimension_numbers<[1], [0], [0], [1], [0, 0, 1, 1], [], []>} : vector<128x32xbf16>, vector<32x128xbf16>, vector<128x128xf32> -> vector<128x128xf32>
    %7 = arith.addf %3, %6 : vector<128x128xf32>
    %c0_6 = arith.constant 0 : index
    %c0_7 = arith.constant 0 : index
    %8 = vector.load %arg6[%c0_6, %c0_7] : memref<128x128xf32, #tpu.memory_space<vmem>>, vector<128x128xf32>
    tpu.vector_store %arg6[%c0_6, %c0_7], %7 {strides = array<i32>} : memref<128x128xf32, #tpu.memory_space<vmem>>, vector<128x128xf32>,
    %c0_i32_8 = arith.constant 0 : i32
    %9 = arith.cmpi eq, %arg1, %c0_i32_8 : i32
    %10 = arith.extui %9 : i1 to i32
    %c0_i32_9 = arith.constant 0 : i32
    %11 = arith.cmpi ne, %10, %c0_i32_9 : i32
    scf.if %11 {
      %c0_10 = arith.constant 0 : index
      %c0_11 = arith.constant 0 : index
      %12 = vector.load %arg6[%c0_10, %c0_11] : memref<128x128xf32, #tpu.memory_space<vmem>>, vector<128x128xf32>
      %c0_12 = arith.constant 0 : index
      %c0_13 = arith.constant 0 : index
      %13 = vector.load %arg4[%c0_12, %c0_13] : memref<1x128xf32, #tpu.memory_space<vmem>>, vector<1x128xf32>
      %14 = vector.broadcast %13 : vector<1x128xf32> to vector<128x128xf32>
      %15 = arith.addf %12, %14 : vector<128x128xf32>
      %cst_14 = arith.constant dense<0xFF800000> : vector<128xf32>
      %16 = vector.multi_reduction <maximumf>, %15, %cst_14 [1] : vector<128x128xf32> to vector<128xf32>
      %17 = vector.shape_cast %16 : vector<128xf32> to vector<128x1xf32>
      %18 = vector.broadcast %17 : vector<128x1xf32> to vector<128x128xf32>
      %19 = arith.subf %15, %18 : vector<128x128xf32>
      %20 = math.exp %19 : vector<128x128xf32>
      %cst_15 = arith.constant dense<0.000000e+00> : vector<128xf32>
      %21 = vector.multi_reduction <add>, %20, %cst_15 [1] : vector<128x128xf32> to vector<128xf32>
      %22 = vector.shape_cast %21 : vector<128xf32> to vector<128x1xf32>
      %23 = vector.broadcast %22 : vector<128x1xf32> to vector<128x128xf32>
      %24 = arith.divf %20, %23 : vector<128x128xf32>
      %c0_16 = arith.constant 0 : index
      %c0_17 = arith.constant 0 : index
      %25 = vector.load %arg5[%c0_16, %c0_17] : memref<128x128xf32, #tpu.memory_space<vmem>>, vector<128x128xf32>
      tpu.vector_store %arg5[%c0_16, %c0_17], %24 {strides = array<i32>} : memref<128x128xf32, #tpu.memory_space<vmem>>, vector<128x128xf32>,
    } else {
    }
    return
  }
  func.func @transform_0(%arg0: i32, %arg1: i32) -> (i32, i32) {
    %c0_i32 = arith.constant 0 : i32
    return %arg0, %arg1 : i32, i32
  }
  func.func @transform_1(%arg0: i32, %arg1: i32) -> (i32, i32) {
    %c0_i32 = arith.constant 0 : i32
    %c0_i32_0 = arith.constant 0 : i32
    %c0_i32_1 = arith.constant 0 : i32
    return %c0_i32, %c0_i32_0 : i32, i32
  }
  func.func @transform_2(%arg0: i32, %arg1: i32) -> (i32, i32) {
    %c0_i32 = arith.constant 0 : i32
    %c0_i32_0 = arith.constant 0 : i32
    %c0_i32_1 = arith.constant 0 : i32
    return %c0_i32, %c0_i32_0 : i32, i32
  }
  func.func @transform_3(%arg0: i32, %arg1: i32) -> (i32, i32) {
    %c0_i32 = arith.constant 0 : i32
    %c0_i32_0 = arith.constant 0 : i32
    return %arg0, %c0_i32 : i32, i32
  }
}

</mosaic_0001>

<llo_original>
// kernel: tpu_custom_call.1
$region0: #{tpu_custom_call.1}
  #allocation0 [shape = 'u32[]', space=smem, size = 0x4, offset = 0x4, fixed_abs, tag = 'smem constant byte address 0x4 - core index']
  #allocation1 [shape = 'u32[72,128]{1,0:T(1,128)}', space=vmem, size = 0x9000, scoped, tag = 'internal scratch']
  #allocation2 [shape = 'f32[128,128]{1,0:T(8,128)}', space=vmem, size = 0x10000, scoped, tag = 'scratch operand']
  %s0 = inlined_call_operand.vmem [shape: bf16[256,32], index: 0, kind: input, shape index: {}]
  %s1 = inlined_call_operand.vmem [shape: bf16[32,128], index: 1, kind: input, shape index: {}]
  %s2 = inlined_call_operand.vmem [shape: f32[1,128], index: 2, kind: input, shape index: {}]
  %s3 = inlined_call_operand.hbm [shape: f32[256,128], index: 3, kind: output, shape index: {}]
  %s4 = sld [smem:[#allocation0]]
  $region53: #{tpu_custom_call.1} parent=0
    _
  %s6 = ssub.s32 1, %s4
  %s7 = scalar_select 0, %s6, %s4
  $region1: #{tpu_custom_call.1} parent=0
    #allocation3 [shape = 'u8[131072]{0}', space=vmem, size = 0x20000, scoped, tag = 'output window, operand 0']
    #allocation4 [shape = 's32[2]{0}', space=sflag, size = 0x8, scoped, tag = 'scoped memory for tpu_custom_call.1']
    %8 = vsyncpa [#allocation4], 0
    %s9 = scalar_lea.sflag [#allocation4], 1
    %10 = vsyncpa %s9, 0
    loop: start=0, step=1, limit=4
    $region2: #{tpu_custom_call.1} parent=1 // loop_pre_header
      _
    $region3: #{tpu_custom_call.1} parent=1 // loop_header
      %s12 = sphi 0, %s16
      %p13 = scmp.ge.s32.totalorder %s12, 4
      %s19 = sphi 0, %s31
      %s20 = sphi 0, %s27
      %s21 = sphi 0, %s19
      %s22 = sphi 0, %s20
      %s23 = sphi 0, %s21
      %s24 = sphi 0, %s22
      %s36 = sphi 0, %s38
      %s39 = sphi 0, %s36
      %s40 = sphi 0, %s39
      %s56 = sphi 0, %s40
      %s60 = sphi 0, %s60
      %s62 = sphi 0, %s60
      %s63 = sphi 0, %s62
      %s77 = sphi 0, %s63
      %s81 = sphi 0, %s81
      %s83 = sphi 0, %s81
      %s84 = sphi 0, %s83
      %s98 = sphi 0, %s84
      %s104 = sphi 0, %s106
      %s107 = sphi 0, %s104
      %s108 = sphi 0, %s107
      %s124 = sphi 0, %s108
    $region4: #{tpu_custom_call.1} parent=1 // loop_header_branch
      %15 = sbr.rel (%p13) target = $region8
    $region5: #{tpu_custom_call.1} parent=1 // loop_body
      %s17 = ssub.s32 %s12, 1
      %s18 = ssub.s32 %s12, 2
      %s25 = sadd.s32 1, %s20
      %p26 = scmp.ge.s32.totalorder %s25, 1
      %s27 = scalar_select %p26, 0, %s25
      %s28 = sadd.s32 1, %s19
      %s29 = scalar_select %p26, %s28, %s19
      %p30 = scmp.ge.s32.totalorder %s29, 2
      %s31 = scalar_select %p30, 0, %s29
      %s32 = ssub.s32 %s19, %s31
      %s33 = ssub.s32 %s20, %s27
      %s34 = sor.u32 %s32, %s33
      %p35 = scmp.eq.s32.totalorder %s34, 0
      %s37 = sadd.s32 %s36, 1
      %s38 = scalar_select %p35, %s36, %s37
      %p41 = pneg %p35
      %p42 = scmp.eq.s32.totalorder %s12, 1
      %p43 = por %p41, %p42
      %p44 = scmp.ne.s32.totalorder %s36, %s39
      %p45 = scmp.eq.s32.totalorder %s12, 0
      %p46 = por %p44, %p45
      %p47 = scmp.ne.s32.totalorder %s36, %s39
      %p48 = scmp.eq.s32.totalorder %s17, 1
      %p49 = por %p47, %p48
      %p50 = scmp.ne.s32.totalorder %s39, %s40
      %p51 = scmp.eq.s32.totalorder %s17, 0
      %p52 = por %p50, %p51
      %p53 = scmp.ne.s32.totalorder %s39, %s40
      %p54 = scmp.eq.s32.totalorder %s18, 1
      %p55 = por %p53, %p54
      %p57 = scmp.ne.s32.totalorder %s40, %s56
      %p58 = scmp.eq.s32.totalorder %s18, 0
      %p59 = por %p57, %p58
      %s61 = sadd.s32 %s60, 1
      %p64 = scmp.eq.s32.totalorder %s12, 1
      %p65 = scmp.ne.s32.totalorder %s60, %s62
      %p66 = scmp.eq.s32.totalorder %s12, 0
      %p67 = por %p65, %p66
      %p68 = scmp.ne.s32.totalorder %s60, %s62
      %p69 = scmp.eq.s32.totalorder %s17, 1
      %p70 = por %p68, %p69
      %p71 = scmp.ne.s32.totalorder %s62, %s63
      %p72 = scmp.eq.s32.totalorder %s17, 0
      %p73 = por %p71, %p72
      %p74 = scmp.ne.s32.totalorder %s62, %s63
      %p75 = scmp.eq.s32.totalorder %s18, 1
      %p76 = por %p74, %p75
      %p78 = scmp.ne.s32.totalorder %s63, %s77
      %p79 = scmp.eq.s32.totalorder %s18, 0
      %p80 = por %p78, %p79
      %s82 = sadd.s32 %s81, 1
      %p85 = scmp.eq.s32.totalorder %s12, 1
      %p86 = scmp.ne.s32.totalorder %s81, %s83
      %p87 = scmp.eq.s32.totalorder %s12, 0
      %p88 = por %p86, %p87
      %p89 = scmp.ne.s32.totalorder %s81, %s83
      %p90 = scmp.eq.s32.totalorder %s17, 1
      %p91 = por %p89, %p90
      %p92 = scmp.ne.s32.totalorder %s83, %s84
      %p93 = scmp.eq.s32.totalorder %s17, 0
      %p94 = por %p92, %p93
      %p95 = scmp.ne.s32.totalorder %s83, %s84
      %p96 = scmp.eq.s32.totalorder %s18, 1
      %p97 = por %p95, %p96
      %p99 = scmp.ne.s32.totalorder %s84, %s98
      %p100 = scmp.eq.s32.totalorder %s18, 0
      %p101 = por %p99, %p100
      %s102 = ssub.s32 %s19, %s31
      %p103 = scmp.eq.s32.totalorder %s102, 0
      %s105 = sadd.s32 %s104, 1
      %s106 = scalar_select %p103, %s104, %s105
      %p109 = pneg %p103
      %p110 = scmp.eq.s32.totalorder %s12, 1
      %p111 = por %p109, %p110
      %p112 = scmp.ne.s32.totalorder %s104, %s107
      %p113 = scmp.eq.s32.totalorder %s12, 0
      %p114 = por %p112, %p113
      %p115 = scmp.ne.s32.totalorder %s104, %s107
      %p116 = scmp.eq.s32.totalorder %s17, 1
      %p117 = por %p115, %p116
      %p118 = scmp.ne.s32.totalorder %s107, %s108
      %p119 = scmp.eq.s32.totalorder %s17, 0
      %p120 = por %p118, %p119
      %p121 = scmp.ne.s32.totalorder %s107, %s108
      %p122 = scmp.eq.s32.totalorder %s18, 1
      %p123 = por %p121, %p122
      %p125 = scmp.ne.s32.totalorder %s108, %s124
      %p126 = scmp.eq.s32.totalorder %s18, 0
      %p127 = por %p125, %p126
      %p128 = scmp.le.s32.totalorder 1, %s12
      %p129 = scmp.lt.s32.totalorder %s12, 3
      %p130 = pnand %p128, %p129
      %p131 = pneg %p130
      // Predicated region
      $region9: #{tpu_custom_call.1} parent=5 // pred_check
        _
      $region10: #{tpu_custom_call.1} parent=5 // pred_check_branch
        %133 = sbr.rel (%p130) target = $region12
      $region11: #{tpu_custom_call.1} parent=5 // pred_region
        %s134 = ssub.s32 %s12, 1
        // Predicated region
        $region13: #{tpu_custom_call.1} parent=11 // pred_check
          %p135 = pneg %p73
        $region14: #{tpu_custom_call.1} parent=11 // pred_check_branch
          %137 = sbr.rel (%p135) target = $region16
        $region15: #{tpu_custom_call.1} parent=11 // pred_region
          _
        $region16: #{tpu_custom_call.1} parent=11 // pred_fallthru
          _
        // Predicated region
        $region17: #{tpu_custom_call.1} parent=11 // pred_check
          %p138 = pneg %p94
        $region18: #{tpu_custom_call.1} parent=11 // pred_check_branch
          %140 = sbr.rel (%p138) target = $region20
        $region19: #{tpu_custom_call.1} parent=11 // pred_region
          _
        $region20: #{tpu_custom_call.1} parent=11 // pred_fallthru
          _
      $region12: #{tpu_custom_call.1} parent=5 // pred_fallthru
        _
      %p141 = scmp.lt.s32.totalorder %s12, 2
      // Predicated region
      $region21: #{tpu_custom_call.1} parent=5 // pred_check
        %p142 = pneg %p141
      $region22: #{tpu_custom_call.1} parent=5 // pred_check_branch
        %144 = sbr.rel (%p142) target = $region24
      $region23: #{tpu_custom_call.1} parent=5 // pred_region
        // Predicated region
        $region25: #{tpu_custom_call.1} parent=23 // pred_check
          %p145 = pneg %p46
        $region26: #{tpu_custom_call.1} parent=23 // pred_check_branch
          %147 = sbr.rel (%p145) target = $region28
        $region27: #{tpu_custom_call.1} parent=23 // pred_region
          %s148 = smul.u32 16, %s19
          %p149 = scmp.lt.s32.totalorder %s148, 31
          %s150 = scalar_select %p149, %s148, 31
          %p151 = scmp.lt.s32.totalorder %s20, 0
          %s152 = scalar_select %p151, %s20, 0
          %s153 = sadd.s32 %s152, %s150
          %s154 = smul.addr %s153, 4
          %s155 = scalar_lea.vmem %s0, %s154
          %s156 = smul.u32 16, %s19
        $region28: #{tpu_custom_call.1} parent=23 // pred_fallthru
          _
      $region24: #{tpu_custom_call.1} parent=5 // pred_fallthru
        _
      %p157 = scmp.le.s32.totalorder 1, %s12
      %p158 = scmp.lt.s32.totalorder %s12, 3
      %p159 = pnand %p157, %p158
      %p160 = pneg %p159
      // Predicated region
      $region29: #{tpu_custom_call.1} parent=5 // pred_check
        _
      $region30: #{tpu_custom_call.1} parent=5 // pred_check_branch
        %162 = sbr.rel (%p159) target = $region32
      $region31: #{tpu_custom_call.1} parent=5 // pred_region
        %s163 = ssub.s32 %s12, 1
        %s164 = smul.u32 16, %s21
        %p165 = scmp.lt.s32.totalorder %s164, 31
        %s166 = scalar_select %p165, %s164, 31
        %p167 = scmp.lt.s32.totalorder %s22, 0
        %s168 = scalar_select %p167, %s22, 0
        %s169 = sadd.s32 %s168, %s166
        %s170 = smul.addr %s169, 4
        %s171 = scalar_lea.vmem %s0, %s170
        %p172 = pneg %p52
        %p173 = pneg %p49
        %p174 = pneg %p73
        %p175 = pneg %p70
        %p176 = pneg %p94
        %p177 = pneg %p91
        %p178 = pneg %p120
        %p179 = pneg %p117
        %s180 = sand.u32 %s107, 1
        %s181 = scalar_lea.sflag [#allocation4], %s180
        %s182 = sand.u32 %s107, 1
        %s183 = smul.addr %s182, 128
        %s184 = scalar_lea.vmem [#allocation3], %s183
        %s185 = smul.u32 16, %s21
        %p186 = scmp.lt.s32.totalorder %s185, 31
        %s187 = scalar_select %p186, %s185, 31
        %p188 = scmp.lt.s32.totalorder %s22, 0
        %s189 = scalar_select %p188, %s22, 0
        %s190 = sadd.s32 %s189, %s187
        %s191 = smul.addr %s190, 4
        %s192 = scalar_lea.vmem %s0, %s191
        %s193 = smul.u32 16, %s21
        %s194 = smul.u32 16, %s21
        %p196 = scmp.eq.s32.totalorder %s22, 0
        // Predicated region
        $region33: #{tpu_custom_call.1} parent=31 // pred_check
          %p197 = pneg %p196
        $region34: #{tpu_custom_call.1} parent=31 // pred_check_branch
          %199 = sbr.rel (%p197) target = $region36
        $region35: #{tpu_custom_call.1} parent=31 // pred_region
          %200 = vst [vmem:[#allocation2] sm:$0xff] 0.0
          %201 = vst [vmem:[#allocation2 + $0x8] sm:$0xff] 0.0
          %202 = vst [vmem:[#allocation2 + $0x10] sm:$0xff] 0.0
          %203 = vst [vmem:[#allocation2 + $0x18] sm:$0xff] 0.0
          %204 = vst [vmem:[#allocation2 + $0x20] sm:$0xff] 0.0
          %205 = vst [vmem:[#allocation2 + $0x28] sm:$0xff] 0.0
          %206 = vst [vmem:[#allocation2 + $0x30] sm:$0xff] 0.0
          %207 = vst [vmem:[#allocation2 + $0x38] sm:$0xff] 0.0
          %208 = vst [vmem:[#allocation2 + $0x40] sm:$0xff] 0.0
          %209 = vst [vmem:[#allocation2 + $0x48] sm:$0xff] 0.0
          %210 = vst [vmem:[#allocation2 + $0x50] sm:$0xff] 0.0
          %211 = vst [vmem:[#allocation2 + $0x58] sm:$0xff] 0.0
          %212 = vst [vmem:[#allocation2 + $0x60] sm:$0xff] 0.0
          %213 = vst [vmem:[#allocation2 + $0x68] sm:$0xff] 0.0
          %214 = vst [vmem:[#allocation2 + $0x70] sm:$0xff] 0.0
          %215 = vst [vmem:[#allocation2 + $0x78] sm:$0xff] 0.0
        $region36: #{tpu_custom_call.1} parent=31 // pred_fallthru
          _
        %v216 = vld [vmem:[#allocation2] sm:$0xff]
        %v217 = vld [vmem:[#allocation2 + $0x8] sm:$0xff]
        %v218 = vld [vmem:[#allocation2 + $0x10] sm:$0xff]
        %v219 = vld [vmem:[#allocation2 + $0x18] sm:$0xff]
        %v220 = vld [vmem:[#allocation2 + $0x20] sm:$0xff]
        %v221 = vld [vmem:[#allocation2 + $0x28] sm:$0xff]
        %v222 = vld [vmem:[#allocation2 + $0x30] sm:$0xff]
        %v223 = vld [vmem:[#allocation2 + $0x38] sm:$0xff]
        %v224 = vld [vmem:[#allocation2 + $0x40] sm:$0xff]
        %v225 = vld [vmem:[#allocation2 + $0x48] sm:$0xff]
        %v226 = vld [vmem:[#allocation2 + $0x50] sm:$0xff]
        %v227 = vld [vmem:[#allocation2 + $0x58] sm:$0xff]
        %v228 = vld [vmem:[#allocation2 + $0x60] sm:$0xff]
        %v229 = vld [vmem:[#allocation2 + $0x68] sm:$0xff]
        %v230 = vld [vmem:[#allocation2 + $0x70] sm:$0xff]
        %v231 = vld [vmem:[#allocation2 + $0x78] sm:$0xff]
        %v232 = vld [vmem:[%s192] sm:$0xf]
        %v233 = vld [vmem:[%s192 + $0x4] sm:$0xf]
        %v234 = vld [vmem:[%s192 + $0x8] sm:$0xf]
        %v235 = vld [vmem:[%s192 + $0xc] sm:$0xf]
        %v236 = vld [vmem:[%s192 + $0x10] sm:$0xf]
        %v237 = vld [vmem:[%s192 + $0x14] sm:$0xf]
        %v238 = vld [vmem:[%s192 + $0x18] sm:$0xf]
        %v239 = vld [vmem:[%s192 + $0x1c] sm:$0xf]
        %v240 = vld [vmem:[%s192 + $0x20] sm:$0xf]
        %v241 = vld [vmem:[%s192 + $0x24] sm:$0xf]
        %v242 = vld [vmem:[%s192 + $0x28] sm:$0xf]
        %v243 = vld [vmem:[%s192 + $0x2c] sm:$0xf]
        %v244 = vld [vmem:[%s192 + $0x30] sm:$0xf]
        %v245 = vld [vmem:[%s192 + $0x34] sm:$0xf]
        %v246 = vld [vmem:[%s192 + $0x38] sm:$0xf]
        %v247 = vld [vmem:[%s192 + $0x3c] sm:$0xf]
        %v248 = vld [vmem:[%s1] sm:$0xf]
        %v249 = vld [vmem:[%s1 + $0x4] sm:$0xf]
        %v250 = vld [vmem:[%s1 + $0x8] sm:$0xf]
        %v251 = vld [vmem:[%s1 + $0xc] sm:$0xf]
        %v268 = vunpack.c.l.b16 %v232
        %v269 = vunpack.c.l.b16 %v233
        %v270 = vunpack.c.l.b16 %v234
        %v271 = vunpack.c.l.b16 %v235
        %v272 = vunpack.c.l.b16 %v236
        %v273 = vunpack.c.l.b16 %v237
        %v274 = vunpack.c.l.b16 %v238
        %v275 = vunpack.c.l.b16 %v239
        %v276 = vunpack.c.l.b16 %v240
        %v277 = vunpack.c.l.b16 %v241
        %v278 = vunpack.c.l.b16 %v242
        %v279 = vunpack.c.l.b16 %v243
        %v280 = vunpack.c.l.b16 %v244
        %v281 = vunpack.c.l.b16 %v245
        %v282 = vunpack.c.l.b16 %v246
        %v283 = vunpack.c.l.b16 %v247
        %v284 = vpack.c.b16 %v269, %v268
        %v285 = vpack.c.b16 %v271, %v270
        %v286 = vpack.c.b16 %v273, %v272
        %v287 = vpack.c.b16 %v275, %v274
        %v288 = vpack.c.b16 %v277, %v276
        %v289 = vpack.c.b16 %v279, %v278
        %v290 = vpack.c.b16 %v281, %v280
        %v291 = vpack.c.b16 %v283, %v282
        %v296 = vunpack.c.l.b16 %v248
        %v297 = vunpack.c.l.b16 %v249
        %v298 = vunpack.c.l.b16 %v250
        %v299 = vunpack.c.l.b16 %v251
        %v300 = vpack.c.b16 %v297, %v296
        %v301 = vpack.c.b16 %v299, %v298
        %vm304 = vcmask 261120
        %v306 = vsel %vm304, %v284, 0
        %v309 = vsel %vm304, %v285, 0
        %v312 = vsel %vm304, %v286, 0
        %v315 = vsel %vm304, %v287, 0
        %v318 = vsel %vm304, %v288, 0
        %v321 = vsel %vm304, %v289, 0
        %v324 = vsel %vm304, %v290, 0
        %v327 = vsel %vm304, %v291, 0
        %329 = vmatpush.bf16.msra.mxu0 0
        %330 = vmatpush.bf16.msra.mxu0 0
        %331 = vmatpush.bf16.msra.mxu0 0
        %332 = vmatpush.bf16.msra.mxu0 0
        %333 = vmatpush.bf16.msra.mxu0 0
        %334 = vmatpush.bf16.msra.mxu0 0
        %335 = vmatpush.bf16.msra.mxu0 %v301
        %336 = vmatpush.bf16.msra.mxu0 %v300
        %337 = vmatmul.bf16.gmra.mxu0 %v306
        %v338 = vpop.f32.mrf.mxu0
        %v339 = vadd.f32 0.0, %v338
        %v340 = vpop.f32.mrf.mxu0
        %v341 = vadd.f32 0.0, %v340
        %342 = vmatmul.bf16.gmra.mxu0 %v309
        %v343 = vpop.f32.mrf.mxu0
        %v344 = vadd.f32 0.0, %v343
        %v345 = vpop.f32.mrf.mxu0
        %v346 = vadd.f32 0.0, %v345
        %347 = vmatmul.bf16.gmra.mxu0 %v312
        %v348 = vpop.f32.mrf.mxu0
        %v349 = vadd.f32 0.0, %v348
        %v350 = vpop.f32.mrf.mxu0
        %v351 = vadd.f32 0.0, %v350
        %352 = vmatmul.bf16.gmra.mxu0 %v315
        %v353 = vpop.f32.mrf.mxu0
        %v354 = vadd.f32 0.0, %v353
        %v355 = vpop.f32.mrf.mxu0
        %v356 = vadd.f32 0.0, %v355
        %357 = vmatmul.bf16.gmra.mxu0 %v318
        %v358 = vpop.f32.mrf.mxu0
        %v359 = vadd.f32 0.0, %v358
        %v360 = vpop.f32.mrf.mxu0
        %v361 = vadd.f32 0.0, %v360
        %362 = vmatmul.bf16.gmra.mxu0 %v321
        %v363 = vpop.f32.mrf.mxu0
        %v364 = vadd.f32 0.0, %v363
        %v365 = vpop.f32.mrf.mxu0
        %v366 = vadd.f32 0.0, %v365
        %367 = vmatmul.bf16.gmra.mxu0 %v324
        %v368 = vpop.f32.mrf.mxu0
        %v369 = vadd.f32 0.0, %v368
        %v370 = vpop.f32.mrf.mxu0
        %v371 = vadd.f32 0.0, %v370
        %372 = vmatmul.bf16.gmra.mxu0 %v327
        %v373 = vpop.f32.mrf.mxu0
        %v374 = vadd.f32 0.0, %v373
        %v375 = vpop.f32.mrf.mxu0
        %v376 = vadd.f32 0.0, %v375
        %377 = vdwg.mxu0
        %v378 = vadd.f32 %v216, %v339
        %v379 = vadd.f32 %v217, %v341
        %v380 = vadd.f32 %v218, %v344
        %v381 = vadd.f32 %v219, %v346
        %v382 = vadd.f32 %v220, %v349
        %v383 = vadd.f32 %v221, %v351
        %v384 = vadd.f32 %v222, %v354
        %v385 = vadd.f32 %v223, %v356
        %v386 = vadd.f32 %v224, %v359
        %v387 = vadd.f32 %v225, %v361
        %v388 = vadd.f32 %v226, %v364
        %v389 = vadd.f32 %v227, %v366
        %v390 = vadd.f32 %v228, %v369
        %v391 = vadd.f32 %v229, %v371
        %v392 = vadd.f32 %v230, %v374
        %v393 = vadd.f32 %v231, %v376
        %394 = vst [vmem:[#allocation2] sm:$0xff] %v378
        %395 = vst [vmem:[#allocation2 + $0x8] sm:$0xff] %v379
        %396 = vst [vmem:[#allocation2 + $0x10] sm:$0xff] %v380
        %397 = vst [vmem:[#allocation2 + $0x18] sm:$0xff] %v381
        %398 = vst [vmem:[#allocation2 + $0x20] sm:$0xff] %v382
        %399 = vst [vmem:[#allocation2 + $0x28] sm:$0xff] %v383
        %400 = vst [vmem:[#allocation2 + $0x30] sm:$0xff] %v384
        %401 = vst [vmem:[#allocation2 + $0x38] sm:$0xff] %v385
        %402 = vst [vmem:[#allocation2 + $0x40] sm:$0xff] %v386
        %403 = vst [vmem:[#allocation2 + $0x48] sm:$0xff] %v387
        %404 = vst [vmem:[#allocation2 + $0x50] sm:$0xff] %v388
        %405 = vst [vmem:[#allocation2 + $0x58] sm:$0xff] %v389
        %406 = vst [vmem:[#allocation2 + $0x60] sm:$0xff] %v390
        %407 = vst [vmem:[#allocation2 + $0x68] sm:$0xff] %v391
        %408 = vst [vmem:[#allocation2 + $0x70] sm:$0xff] %v392
        %409 = vst [vmem:[#allocation2 + $0x78] sm:$0xff] %v393
        // Predicated region
        $region37: #{tpu_custom_call.1} parent=31 // pred_check
          %p410 = pneg %p196
        $region38: #{tpu_custom_call.1} parent=31 // pred_check_branch
          %412 = sbr.rel (%p410) target = $region40
        $region39: #{tpu_custom_call.1} parent=31 // pred_region
          %v413 = vld [vmem:[#allocation2] sm:$0xff]
          %v414 = vld [vmem:[#allocation2 + $0x8] sm:$0xff]
          %v415 = vld [vmem:[#allocation2 + $0x10] sm:$0xff]
          %v416 = vld [vmem:[#allocation2 + $0x18] sm:$0xff]
          %v417 = vld [vmem:[#allocation2 + $0x20] sm:$0xff]
          %v418 = vld [vmem:[#allocation2 + $0x28] sm:$0xff]
          %v419 = vld [vmem:[#allocation2 + $0x30] sm:$0xff]
          %v420 = vld [vmem:[#allocation2 + $0x38] sm:$0xff]
          %v421 = vld [vmem:[#allocation2 + $0x40] sm:$0xff]
          %v422 = vld [vmem:[#allocation2 + $0x48] sm:$0xff]
          %v423 = vld [vmem:[#allocation2 + $0x50] sm:$0xff]
          %v424 = vld [vmem:[#allocation2 + $0x58] sm:$0xff]
          %v425 = vld [vmem:[#allocation2 + $0x60] sm:$0xff]
          %v426 = vld [vmem:[#allocation2 + $0x68] sm:$0xff]
          %v427 = vld [vmem:[#allocation2 + $0x70] sm:$0xff]
          %v428 = vld [vmem:[#allocation2 + $0x78] sm:$0xff]
          %v429 = vld [vmem:[%s2] sm:$0x1]
          %v431 = vperm.slane %v429, 0
          %v433 = vadd.f32 %v413, %v431
          %v434 = vadd.f32 %v414, %v431
          %v435 = vadd.f32 %v415, %v431
          %v436 = vadd.f32 %v416, %v431
          %v437 = vadd.f32 %v417, %v431
          %v438 = vadd.f32 %v418, %v431
          %v439 = vadd.f32 %v419, %v431
          %v440 = vadd.f32 %v420, %v431
          %v441 = vadd.f32 %v421, %v431
          %v442 = vadd.f32 %v422, %v431
          %v443 = vadd.f32 %v423, %v431
          %v444 = vadd.f32 %v424, %v431
          %v445 = vadd.f32 %v425, %v431
          %v446 = vadd.f32 %v426, %v431
          %v447 = vadd.f32 %v427, %v431
          %v448 = vadd.f32 %v428, %v431
          %449 = vmax.xlane.f32.xlu0 %v433
          %v450 = vpop.xlane.xlu0 %449
          %451 = vmax.xlane.f32.xlu0 %v434
          %v452 = vpop.xlane.xlu0 %451
          %453 = vmax.xlane.f32.xlu0 %v435
          %v454 = vpop.xlane.xlu0 %453
          %455 = vmax.xlane.f32.xlu0 %v436
          %v456 = vpop.xlane.xlu0 %455
          %457 = vmax.xlane.f32.xlu0 %v437
          %v458 = vpop.xlane.xlu0 %457
          %459 = vmax.xlane.f32.xlu0 %v438
          %v460 = vpop.xlane.xlu0 %459
          %461 = vmax.xlane.f32.xlu0 %v439
          %v462 = vpop.xlane.xlu0 %461
          %463 = vmax.xlane.f32.xlu0 %v440
          %v464 = vpop.xlane.xlu0 %463
          %465 = vmax.xlane.f32.xlu0 %v441
          %v466 = vpop.xlane.xlu0 %465
          %467 = vmax.xlane.f32.xlu0 %v442
          %v468 = vpop.xlane.xlu0 %467
          %469 = vmax.xlane.f32.xlu0 %v443
          %v470 = vpop.xlane.xlu0 %469
          %471 = vmax.xlane.f32.xlu0 %v444
          %v472 = vpop.xlane.xlu0 %471
          %473 = vmax.xlane.f32.xlu0 %v445
          %v474 = vpop.xlane.xlu0 %473
          %475 = vmax.xlane.f32.xlu0 %v446
          %v476 = vpop.xlane.xlu0 %475
          %477 = vmax.xlane.f32.xlu0 %v447
          %v478 = vpop.xlane.xlu0 %477
          %479 = vmax.xlane.f32.xlu0 %v448
          %v480 = vpop.xlane.xlu0 %479
          %v481 = vsub.f32 %v433, %v450
          %v482 = vsub.f32 %v434, %v452
          %v483 = vsub.f32 %v435, %v454
          %v484 = vsub.f32 %v436, %v456
          %v485 = vsub.f32 %v437, %v458
          %v486 = vsub.f32 %v438, %v460
          %v487 = vsub.f32 %v439, %v462
          %v488 = vsub.f32 %v440, %v464
          %v489 = vsub.f32 %v441, %v466
          %v490 = vsub.f32 %v442, %v468
          %v491 = vsub.f32 %v443, %v470
          %v492 = vsub.f32 %v444, %v472
          %v493 = vsub.f32 %v445, %v474
          %v494 = vsub.f32 %v446, %v476
          %v495 = vsub.f32 %v447, %v478
          %v496 = vsub.f32 %v448, %v480
          %v497 = vmul.f32 %v481, 1.442695
          %v498 = vpow.pop %v497
          %v499 = vmul.f32 %v482, 1.442695
          %v500 = vpow.pop %v499
          %v501 = vmul.f32 %v483, 1.442695
          %v502 = vpow.pop %v501
          %v503 = vmul.f32 %v484, 1.442695
          %v504 = vpow.pop %v503
          %v505 = vmul.f32 %v485, 1.442695
          %v506 = vpow.pop %v505
          %v507 = vmul.f32 %v486, 1.442695
          %v508 = vpow.pop %v507
          %v509 = vmul.f32 %v487, 1.442695
          %v510 = vpow.pop %v509
          %v511 = vmul.f32 %v488, 1.442695
          %v512 = vpow.pop %v511
          %v513 = vmul.f32 %v489, 1.442695
          %v514 = vpow.pop %v513
          %v515 = vmul.f32 %v490, 1.442695
          %v516 = vpow.pop %v515
          %v517 = vmul.f32 %v491, 1.442695
          %v518 = vpow.pop %v517
          %v519 = vmul.f32 %v492, 1.442695
          %v520 = vpow.pop %v519
          %v521 = vmul.f32 %v493, 1.442695
          %v522 = vpow.pop %v521
          %v523 = vmul.f32 %v494, 1.442695
          %v524 = vpow.pop %v523
          %v525 = vmul.f32 %v495, 1.442695
          %v526 = vpow.pop %v525
          %v527 = vmul.f32 %v496, 1.442695
          %v528 = vpow.pop %v527
          %529 = vadd.xlane.f32.xlu0 %v498
          %v530 = vpop.xlane.xlu0 %529
          %531 = vadd.xlane.f32.xlu0 %v500
          %v532 = vpop.xlane.xlu0 %531
          %533 = vadd.xlane.f32.xlu0 %v502
          %v534 = vpop.xlane.xlu0 %533
          %535 = vadd.xlane.f32.xlu0 %v504
          %v536 = vpop.xlane.xlu0 %535
          %537 = vadd.xlane.f32.xlu0 %v506
          %v538 = vpop.xlane.xlu0 %537
          %539 = vadd.xlane.f32.xlu0 %v508
          %v540 = vpop.xlane.xlu0 %539
          %541 = vadd.xlane.f32.xlu0 %v510
          %v542 = vpop.xlane.xlu0 %541
          %543 = vadd.xlane.f32.xlu0 %v512
          %v544 = vpop.xlane.xlu0 %543
          %545 = vadd.xlane.f32.xlu0 %v514
          %v546 = vpop.xlane.xlu0 %545
          %547 = vadd.xlane.f32.xlu0 %v516
          %v548 = vpop.xlane.xlu0 %547
          %549 = vadd.xlane.f32.xlu0 %v518
          %v550 = vpop.xlane.xlu0 %549
          %551 = vadd.xlane.f32.xlu0 %v520
          %v552 = vpop.xlane.xlu0 %551
          %553 = vadd.xlane.f32.xlu0 %v522
          %v554 = vpop.xlane.xlu0 %553
          %555 = vadd.xlane.f32.xlu0 %v524
          %v556 = vpop.xlane.xlu0 %555
          %557 = vadd.xlane.f32.xlu0 %v526
          %v558 = vpop.xlane.xlu0 %557
          %559 = vadd.xlane.f32.xlu0 %v528
          %v560 = vpop.xlane.xlu0 %559
          %v561 = vrcp.pop %v530
          %v562 = vmul.f32 %v530, %v561
          %v563 = vsub.f32 1.0, %v562
          %v564 = vmul.f32 %v561, %v563
          %v565 = vadd.f32 %v561, %v564
          %vm566 = vweird.f32 %v530
          %vm567 = vweird.f32 %v561
          %vm568 = vmor %vm566, %vm567
          %v569 = vsel %vm568, %v561, %v565
          %v570 = vand.u32 2147483647, %v530
          %vm571 = vcmp.eq.f32.partialorder %v570, 8.507059e+37
          %v572 = vand.u32 %v530, 2147483648
          %v573 = vor.u32 1.1754944e-38, %v572
          %v574 = vsel %vm571, %v573, %v569
          %v575 = vmul.f32 %v498, %v574
          %v576 = vrcp.pop %v532
          %v577 = vmul.f32 %v532, %v576
          %v578 = vsub.f32 1.0, %v577
          %v579 = vmul.f32 %v576, %v578
          %v580 = vadd.f32 %v576, %v579
          %vm581 = vweird.f32 %v532
          %vm582 = vweird.f32 %v576
          %vm583 = vmor %vm581, %vm582
          %v584 = vsel %vm583, %v576, %v580
          %v585 = vand.u32 2147483647, %v532
          %vm586 = vcmp.eq.f32.partialorder %v585, 8.507059e+37
          %v587 = vand.u32 %v532, 2147483648
          %v588 = vor.u32 1.1754944e-38, %v587
          %v589 = vsel %vm586, %v588, %v584
          %v590 = vmul.f32 %v500, %v589
          %v591 = vrcp.pop %v534
          %v592 = vmul.f32 %v534, %v591
          %v593 = vsub.f32 1.0, %v592
          %v594 = vmul.f32 %v591, %v593
          %v595 = vadd.f32 %v591, %v594
          %vm596 = vweird.f32 %v534
          %vm597 = vweird.f32 %v591
          %vm598 = vmor %vm596, %vm597
          %v599 = vsel %vm598, %v591, %v595
          %v600 = vand.u32 2147483647, %v534
          %vm601 = vcmp.eq.f32.partialorder %v600, 8.507059e+37
          %v602 = vand.u32 %v534, 2147483648
          %v603 = vor.u32 1.1754944e-38, %v602
          %v604 = vsel %vm601, %v603, %v599
          %v605 = vmul.f32 %v502, %v604
          %v606 = vrcp.pop %v536
          %v607 = vmul.f32 %v536, %v606
          %v608 = vsub.f32 1.0, %v607
          %v609 = vmul.f32 %v606, %v608
          %v610 = vadd.f32 %v606, %v609
          %vm611 = vweird.f32 %v536
          %vm612 = vweird.f32 %v606
          %vm613 = vmor %vm611, %vm612
          %v614 = vsel %vm613, %v606, %v610
          %v615 = vand.u32 2147483647, %v536
          %vm616 = vcmp.eq.f32.partialorder %v615, 8.507059e+37
          %v617 = vand.u32 %v536, 2147483648
          %v618 = vor.u32 1.1754944e-38, %v617
          %v619 = vsel %vm616, %v618, %v614
          %v620 = vmul.f32 %v504, %v619
          %v621 = vrcp.pop %v538
          %v622 = vmul.f32 %v538, %v621
          %v623 = vsub.f32 1.0, %v622
          %v624 = vmul.f32 %v621, %v623
          %v625 = vadd.f32 %v621, %v624
          %vm626 = vweird.f32 %v538
          %vm627 = vweird.f32 %v621
          %vm628 = vmor %vm626, %vm627
          %v629 = vsel %vm628, %v621, %v625
          %v630 = vand.u32 2147483647, %v538
          %vm631 = vcmp.eq.f32.partialorder %v630, 8.507059e+37
          %v632 = vand.u32 %v538, 2147483648
          %v633 = vor.u32 1.1754944e-38, %v632
          %v634 = vsel %vm631, %v633, %v629
          %v635 = vmul.f32 %v506, %v634
          %v636 = vrcp.pop %v540
          %v637 = vmul.f32 %v540, %v636
          %v638 = vsub.f32 1.0, %v637
          %v639 = vmul.f32 %v636, %v638
          %v640 = vadd.f32 %v636, %v639
          %vm641 = vweird.f32 %v540
          %vm642 = vweird.f32 %v636
          %vm643 = vmor %vm641, %vm642
          %v644 = vsel %vm643, %v636, %v640
          %v645 = vand.u32 2147483647, %v540
          %vm646 = vcmp.eq.f32.partialorder %v645, 8.507059e+37
          %v647 = vand.u32 %v540, 2147483648
          %v648 = vor.u32 1.1754944e-38, %v647
          %v649 = vsel %vm646, %v648, %v644
          %v650 = vmul.f32 %v508, %v649
          %v651 = vrcp.pop %v542
          %v652 = vmul.f32 %v542, %v651
          %v653 = vsub.f32 1.0, %v652
          %v654 = vmul.f32 %v651, %v653
          %v655 = vadd.f32 %v651, %v654
          %vm656 = vweird.f32 %v542
          %vm657 = vweird.f32 %v651
          %vm658 = vmor %vm656, %vm657
          %v659 = vsel %vm658, %v651, %v655
          %v660 = vand.u32 2147483647, %v542
          %vm661 = vcmp.eq.f32.partialorder %v660, 8.507059e+37
          %v662 = vand.u32 %v542, 2147483648
          %v663 = vor.u32 1.1754944e-38, %v662
          %v664 = vsel %vm661, %v663, %v659
          %v665 = vmul.f32 %v510, %v664
          %v666 = vrcp.pop %v544
          %v667 = vmul.f32 %v544, %v666
          %v668 = vsub.f32 1.0, %v667
          %v669 = vmul.f32 %v666, %v668
          %v670 = vadd.f32 %v666, %v669
          %vm671 = vweird.f32 %v544
          %vm672 = vweird.f32 %v666
          %vm673 = vmor %vm671, %vm672
          %v674 = vsel %vm673, %v666, %v670
          %v675 = vand.u32 2147483647, %v544
          %vm676 = vcmp.eq.f32.partialorder %v675, 8.507059e+37
          %v677 = vand.u32 %v544, 2147483648
          %v678 = vor.u32 1.1754944e-38, %v677
          %v679 = vsel %vm676, %v678, %v674
          %v680 = vmul.f32 %v512, %v679
          %v681 = vrcp.pop %v546
          %v682 = vmul.f32 %v546, %v681
          %v683 = vsub.f32 1.0, %v682
          %v684 = vmul.f32 %v681, %v683
          %v685 = vadd.f32 %v681, %v684
          %vm686 = vweird.f32 %v546
          %vm687 = vweird.f32 %v681
          %vm688 = vmor %vm686, %vm687
          %v689 = vsel %vm688, %v681, %v685
          %v690 = vand.u32 2147483647, %v546
          %vm691 = vcmp.eq.f32.partialorder %v690, 8.507059e+37
          %v692 = vand.u32 %v546, 2147483648
          %v693 = vor.u32 1.1754944e-38, %v692
          %v694 = vsel %vm691, %v693, %v689
          %v695 = vmul.f32 %v514, %v694
          %v696 = vrcp.pop %v548
          %v697 = vmul.f32 %v548, %v696
          %v698 = vsub.f32 1.0, %v697
          %v699 = vmul.f32 %v696, %v698
          %v700 = vadd.f32 %v696, %v699
          %vm701 = vweird.f32 %v548
          %vm702 = vweird.f32 %v696
          %vm703 = vmor %vm701, %vm702
          %v704 = vsel %vm703, %v696, %v700
          %v705 = vand.u32 2147483647, %v548
          %vm706 = vcmp.eq.f32.partialorder %v705, 8.507059e+37
          %v707 = vand.u32 %v548, 2147483648
          %v708 = vor.u32 1.1754944e-38, %v707
          %v709 = vsel %vm706, %v708, %v704
          %v710 = vmul.f32 %v516, %v709
          %v711 = vrcp.pop %v550
          %v712 = vmul.f32 %v550, %v711
          %v713 = vsub.f32 1.0, %v712
          %v714 = vmul.f32 %v711, %v713
          %v715 = vadd.f32 %v711, %v714
          %vm716 = vweird.f32 %v550
          %vm717 = vweird.f32 %v711
          %vm718 = vmor %vm716, %vm717
          %v719 = vsel %vm718, %v711, %v715
          %v720 = vand.u32 2147483647, %v550
          %vm721 = vcmp.eq.f32.partialorder %v720, 8.507059e+37
          %v722 = vand.u32 %v550, 2147483648
          %v723 = vor.u32 1.1754944e-38, %v722
          %v724 = vsel %vm721, %v723, %v719
          %v725 = vmul.f32 %v518, %v724
          %v726 = vrcp.pop %v552
          %v727 = vmul.f32 %v552, %v726
          %v728 = vsub.f32 1.0, %v727
          %v729 = vmul.f32 %v726, %v728
          %v730 = vadd.f32 %v726, %v729
          %vm731 = vweird.f32 %v552
          %vm732 = vweird.f32 %v726
          %vm733 = vmor %vm731, %vm732
          %v734 = vsel %vm733, %v726, %v730
          %v735 = vand.u32 2147483647, %v552
          %vm736 = vcmp.eq.f32.partialorder %v735, 8.507059e+37
          %v737 = vand.u32 %v552, 2147483648
          %v738 = vor.u32 1.1754944e-38, %v737
          %v739 = vsel %vm736, %v738, %v734
          %v740 = vmul.f32 %v520, %v739
          %v741 = vrcp.pop %v554
          %v742 = vmul.f32 %v554, %v741
          %v743 = vsub.f32 1.0, %v742
          %v744 = vmul.f32 %v741, %v743
          %v745 = vadd.f32 %v741, %v744
          %vm746 = vweird.f32 %v554
          %vm747 = vweird.f32 %v741
          %vm748 = vmor %vm746, %vm747
          %v749 = vsel %vm748, %v741, %v745
          %v750 = vand.u32 2147483647, %v554
          %vm751 = vcmp.eq.f32.partialorder %v750, 8.507059e+37
          %v752 = vand.u32 %v554, 2147483648
          %v753 = vor.u32 1.1754944e-38, %v752
          %v754 = vsel %vm751, %v753, %v749
          %v755 = vmul.f32 %v522, %v754
          %v756 = vrcp.pop %v556
          %v757 = vmul.f32 %v556, %v756
          %v758 = vsub.f32 1.0, %v757
          %v759 = vmul.f32 %v756, %v758
          %v760 = vadd.f32 %v756, %v759
          %vm761 = vweird.f32 %v556
          %vm762 = vweird.f32 %v756
          %vm763 = vmor %vm761, %vm762
          %v764 = vsel %vm763, %v756, %v760
          %v765 = vand.u32 2147483647, %v556
          %vm766 = vcmp.eq.f32.partialorder %v765, 8.507059e+37
          %v767 = vand.u32 %v556, 2147483648
          %v768 = vor.u32 1.1754944e-38, %v767
          %v769 = vsel %vm766, %v768, %v764
          %v770 = vmul.f32 %v524, %v769
          %v771 = vrcp.pop %v558
          %v772 = vmul.f32 %v558, %v771
          %v773 = vsub.f32 1.0, %v772
          %v774 = vmul.f32 %v771, %v773
          %v775 = vadd.f32 %v771, %v774
          %vm776 = vweird.f32 %v558
          %vm777 = vweird.f32 %v771
          %vm778 = vmor %vm776, %vm777
          %v779 = vsel %vm778, %v771, %v775
          %v780 = vand.u32 2147483647, %v558
          %vm781 = vcmp.eq.f32.partialorder %v780, 8.507059e+37
          %v782 = vand.u32 %v558, 2147483648
          %v783 = vor.u32 1.1754944e-38, %v782
          %v784 = vsel %vm781, %v783, %v779
          %v785 = vmul.f32 %v526, %v784
          %v786 = vrcp.pop %v560
          %v787 = vmul.f32 %v560, %v786
          %v788 = vsub.f32 1.0, %v787
          %v789 = vmul.f32 %v786, %v788
          %v790 = vadd.f32 %v786, %v789
          %vm791 = vweird.f32 %v560
          %vm792 = vweird.f32 %v786
          %vm793 = vmor %vm791, %vm792
          %v794 = vsel %vm793, %v786, %v790
          %v795 = vand.u32 2147483647, %v560
          %vm796 = vcmp.eq.f32.partialorder %v795, 8.507059e+37
          %v797 = vand.u32 %v560, 2147483648
          %v798 = vor.u32 1.1754944e-38, %v797
          %v799 = vsel %vm796, %v798, %v794
          %v800 = vmul.f32 %v528, %v799
          %801 = vst [vmem:[%s184] sm:$0xff] %v575
          %802 = vst [vmem:[%s184 + $0x8] sm:$0xff] %v590
          %803 = vst [vmem:[%s184 + $0x10] sm:$0xff] %v605
          %804 = vst [vmem:[%s184 + $0x18] sm:$0xff] %v620
          %805 = vst [vmem:[%s184 + $0x20] sm:$0xff] %v635
          %806 = vst [vmem:[%s184 + $0x28] sm:$0xff] %v650
          %807 = vst [vmem:[%s184 + $0x30] sm:$0xff] %v665
          %808 = vst [vmem:[%s184 + $0x38] sm:$0xff] %v680
          %809 = vst [vmem:[%s184 + $0x40] sm:$0xff] %v695
          %810 = vst [vmem:[%s184 + $0x48] sm:$0xff] %v710
          %811 = vst [vmem:[%s184 + $0x50] sm:$0xff] %v725
          %812 = vst [vmem:[%s184 + $0x58] sm:$0xff] %v740
          %813 = vst [vmem:[%s184 + $0x60] sm:$0xff] %v755
          %814 = vst [vmem:[%s184 + $0x68] sm:$0xff] %v770
          %815 = vst [vmem:[%s184 + $0x70] sm:$0xff] %v785
          %816 = vst [vmem:[%s184 + $0x78] sm:$0xff] %v800
        $region40: #{tpu_custom_call.1} parent=31 // pred_fallthru
          _
        %s817 = sand.u32 %s107, 1
        %s818 = scalar_lea.sflag [#allocation4], %s817
        %s819 = sand.u32 %s107, 1
        %s820 = smul.addr %s819, 128
        %s821 = scalar_lea.vmem [#allocation3], %s820
        // Predicated region
        $region41: #{tpu_custom_call.1} parent=31 // pred_check
          %p822 = pneg %p117
        $region42: #{tpu_custom_call.1} parent=31 // pred_check_branch
          %824 = sbr.rel (%p822) target = $region44
        $region43: #{tpu_custom_call.1} parent=31 // pred_region
          %s825 = smul.u32 16, %s21
          %827 = vsyncadd %s818, 0
          %s828 = smul.addr %s825, 8
          %s829 = scalar_lea.hbm %s3, %s828
          %s830 = sshll.u32 %s821, 4
          %s831 = int_to_ptr.vmem [resolvable:$true] %s830
          %s832 = sshll.u32 %s829, 4
          %s833 = int_to_ptr.hbm [resolvable:$true] %s832
          %838 = dma.vmem_to_hbm [thread:$0]  %s831, 2048, %s833, %s818, 128, 128, 8
        $region44: #{tpu_custom_call.1} parent=31 // pred_fallthru
          _
      $region32: #{tpu_custom_call.1} parent=5 // pred_fallthru
        _
      %p839 = scmp.le.s32.totalorder 2, %s12
      // Predicated region
      $region45: #{tpu_custom_call.1} parent=5 // pred_check
        %p840 = pneg %p839
      $region46: #{tpu_custom_call.1} parent=5 // pred_check_branch
        %842 = sbr.rel (%p840) target = $region48
      $region47: #{tpu_custom_call.1} parent=5 // pred_region
        %s843 = ssub.s32 %s12, 2
        // Predicated region
        $region49: #{tpu_custom_call.1} parent=47 // pred_check
          %p844 = pneg %p123
        $region50: #{tpu_custom_call.1} parent=47 // pred_check_branch
          %846 = sbr.rel (%p844) target = $region52
        $region51: #{tpu_custom_call.1} parent=47 // pred_region
          %s847 = sand.u32 %s108, 1
          %s848 = scalar_lea.sflag [#allocation4], %s847
          %s849 = sand.u32 %s108, 1
          %s850 = smul.addr %s849, 128
          %s851 = scalar_lea.vmem [#allocation3], %s850
          %853 = dma.done %s848, 2048
        $region52: #{tpu_custom_call.1} parent=47 // pred_fallthru
          _
      $region48: #{tpu_custom_call.1} parent=5 // pred_fallthru
        _
    $region6: #{tpu_custom_call.1} parent=1 // loop_footer
      %s16 = sadd.s32 1, %s12
    $region7: #{tpu_custom_call.1} parent=1 // loop_footer_branch
      %11 = sbr.rel target = $region3
    $region8: #{tpu_custom_call.1} parent=1 // loop_exit
      _
    %854 = vsyncpa [#allocation4], 1
    %s855 = scalar_lea.sflag [#allocation4], 1
    %856 = vsyncpa %s855, 1

// kernel: tpu_custom_call.1
$region0: #{tpu_custom_call.1}
  #allocation0 [shape = 'u32[]', space=smem, size = 0x4, offset = 0x4, fixed_abs, tag = 'smem constant byte address 0x4 - core index']
  #allocation1 [shape = 'u32[72,128]{1,0:T(1,128)}', space=vmem, size = 0x9000, scoped, tag = 'internal scratch']
  #allocation2 [shape = 'f32[128,128]{1,0:T(8,128)}', space=vmem, size = 0x10000, scoped, tag = 'scratch operand']
  %s0 = inlined_call_operand.vmem [shape: bf16[256,32], index: 0, kind: input, shape index: {}]
  %s1 = inlined_call_operand.vmem [shape: bf16[32,128], index: 1, kind: input, shape index: {}]
  %s2 = inlined_call_operand.vmem [shape: f32[1,128], index: 2, kind: input, shape index: {}]
  %s3 = inlined_call_operand.hbm [shape: f32[256,128], index: 3, kind: output, shape index: {}]
  %s4 = sld [smem:[#allocation0]]
  $region53: #{tpu_custom_call.1} parent=0
    _
  %s6 = ssub.s32 1, %s4
  %s7 = scalar_select 0, %s6, %s4
  $region1: #{tpu_custom_call.1} parent=0
    #allocation3 [shape = 'u8[131072]{0}', space=vmem, size = 0x20000, scoped, tag = 'output window, operand 0']
    #allocation4 [shape = 's32[2]{0}', space=sflag, size = 0x8, scoped, tag = 'scoped memory for tpu_custom_call.1']
    %8 = vsyncpa [#allocation4], 0
    %s9 = scalar_lea.sflag [#allocation4], 1
    %10 = vsyncpa %s9, 0
    loop: start=0, step=1, limit=4
    $region2: #{tpu_custom_call.1} parent=1 // loop_pre_header
      _
    $region3: #{tpu_custom_call.1} parent=1 // loop_header
      %s12 = sphi 0, %s16
      %p13 = scmp.ge.s32.totalorder %s12, 4
      %s19 = sphi 0, %s31
      %s20 = sphi 0, %s27
      %s21 = sphi 0, %s19
      %s22 = sphi 0, %s20
      %s23 = sphi 0, %s21
      %s24 = sphi 0, %s22
      %s36 = sphi 0, %s38
      %s39 = sphi 0, %s36
      %s40 = sphi 0, %s39
      %s56 = sphi 0, %s40
      %s60 = sphi 0, %s60
      %s62 = sphi 0, %s60
      %s63 = sphi 0, %s62
      %s77 = sphi 0, %s63
      %s81 = sphi 0, %s81
      %s83 = sphi 0, %s81
      %s84 = sphi 0, %s83
      %s98 = sphi 0, %s84
      %s104 = sphi 0, %s106
      %s107 = sphi 0, %s104
      %s108 = sphi 0, %s107
      %s124 = sphi 0, %s108
    $region4: #{tpu_custom_call.1} parent=1 // loop_header_branch
      %15 = sbr.rel (%p13) target = $region8
    $region5: #{tpu_custom_call.1} parent=1 // loop_body
      %s17 = ssub.s32 %s12, 1
      %s18 = ssub.s32 %s12, 2
      %s25 = sadd.s32 1, %s20
      %p26 = scmp.ge.s32.totalorder %s25, 1
      %s27 = scalar_select %p26, 0, %s25
      %s28 = sadd.s32 1, %s19
      %s29 = scalar_select %p26, %s28, %s19
      %p30 = scmp.ge.s32.totalorder %s29, 2
      %s31 = scalar_select %p30, 0, %s29
      %s32 = ssub.s32 %s19, %s31
      %s33 = ssub.s32 %s20, %s27
      %s34 = sor.u32 %s32, %s33
      %p35 = scmp.eq.s32.totalorder %s34, 0
      %s37 = sadd.s32 %s36, 1
      %s38 = scalar_select %p35, %s36, %s37
      %p41 = pneg %p35
      %p42 = scmp.eq.s32.totalorder %s12, 1
      %p43 = por %p41, %p42
      %p44 = scmp.ne.s32.totalorder %s36, %s39
      %p45 = scmp.eq.s32.totalorder %s12, 0
      %p46 = por %p44, %p45
      %p47 = scmp.ne.s32.totalorder %s36, %s39
      %p48 = scmp.eq.s32.totalorder %s17, 1
      %p49 = por %p47, %p48
      %p50 = scmp.ne.s32.totalorder %s39, %s40
      %p51 = scmp.eq.s32.totalorder %s17, 0
      %p52 = por %p50, %p51
      %p53 = scmp.ne.s32.totalorder %s39, %s40
      %p54 = scmp.eq.s32.totalorder %s18, 1
      %p55 = por %p53, %p54
      %p57 = scmp.ne.s32.totalorder %s40, %s56
      %p58 = scmp.eq.s32.totalorder %s18, 0
      %p59 = por %p57, %p58
      %s61 = sadd.s32 %s60, 1
      %p64 = scmp.eq.s32.totalorder %s12, 1
      %p65 = scmp.ne.s32.totalorder %s60, %s62
      %p66 = scmp.eq.s32.totalorder %s12, 0
      %p67 = por %p65, %p66
      %p68 = scmp.ne.s32.totalorder %s60, %s62
      %p69 = scmp.eq.s32.totalorder %s17, 1
      %p70 = por %p68, %p69
      %p71 = scmp.ne.s32.totalorder %s62, %s63
      %p72 = scmp.eq.s32.totalorder %s17, 0
      %p73 = por %p71, %p72
      %p74 = scmp.ne.s32.totalorder %s62, %s63
      %p75 = scmp.eq.s32.totalorder %s18, 1
      %p76 = por %p74, %p75
      %p78 = scmp.ne.s32.totalorder %s63, %s77
      %p79 = scmp.eq.s32.totalorder %s18, 0
      %p80 = por %p78, %p79
      %s82 = sadd.s32 %s81, 1
      %p85 = scmp.eq.s32.totalorder %s12, 1
      %p86 = scmp.ne.s32.totalorder %s81, %s83
      %p87 = scmp.eq.s32.totalorder %s12, 0
      %p88 = por %p86, %p87
      %p89 = scmp.ne.s32.totalorder %s81, %s83
      %p90 = scmp.eq.s32.totalorder %s17, 1
      %p91 = por %p89, %p90
      %p92 = scmp.ne.s32.totalorder %s83, %s84
      %p93 = scmp.eq.s32.totalorder %s17, 0
      %p94 = por %p92, %p93
      %p95 = scmp.ne.s32.totalorder %s83, %s84
      %p96 = scmp.eq.s32.totalorder %s18, 1
      %p97 = por %p95, %p96
      %p99 = scmp.ne.s32.totalorder %s84, %s98
      %p100 = scmp.eq.s32.totalorder %s18, 0
      %p101 = por %p99, %p100
      %s102 = ssub.s32 %s19, %s31
      %p103 = scmp.eq.s32.totalorder %s102, 0
      %s105 = sadd.s32 %s104, 1
      %s106 = scalar_select %p103, %s104, %s105
      %p109 = pneg %p103
      %p110 = scmp.eq.s32.totalorder %s12, 1
      %p111 = por %p109, %p110
      %p112 = scmp.ne.s32.totalorder %s104, %s107
      %p113 = scmp.eq.s32.totalorder %s12, 0
      %p114 = por %p112, %p113
      %p115 = scmp.ne.s32.totalorder %s104, %s107
      %p116 = scmp.eq.s32.totalorder %s17, 1
      %p117 = por %p115, %p116
      %p118 = scmp.ne.s32.totalorder %s107, %s108
      %p119 = scmp.eq.s32.totalorder %s17, 0
      %p120 = por %p118, %p119
      %p121 = scmp.ne.s32.totalorder %s107, %s108
      %p122 = scmp.eq.s32.totalorder %s18, 1
      %p123 = por %p121, %p122
      %p125 = scmp.ne.s32.totalorder %s108, %s124
      %p126 = scmp.eq.s32.totalorder %s18, 0
      %p127 = por %p125, %p126
      %p128 = scmp.le.s32.totalorder 1, %s12
      %p129 = scmp.lt.s32.totalorder %s12, 3
      %p130 = pnand %p128, %p129
      %p131 = pneg %p130
      // Predicated region
      $region9: #{tpu_custom_call.1} parent=5 // pred_check
        _
      $region10: #{tpu_custom_call.1} parent=5 // pred_check_branch
        %133 = sbr.rel (%p130) target = $region12
      $region11: #{tpu_custom_call.1} parent=5 // pred_region
        %s134 = ssub.s32 %s12, 1
        // Predicated region
        $region13: #{tpu_custom_call.1} parent=11 // pred_check
          %p135 = pneg %p73
        $region14: #{tpu_custom_call.1} parent=11 // pred_check_branch
          %137 = sbr.rel (%p135) target = $region16
        $region15: #{tpu_custom_call.1} parent=11 // pred_region
          _
        $region16: #{tpu_custom_call.1} parent=11 // pred_fallthru
          _
        // Predicated region
        $region17: #{tpu_custom_call.1} parent=11 // pred_check
          %p138 = pneg %p94
        $region18: #{tpu_custom_call.1} parent=11 // pred_check_branch
          %140 = sbr.rel (%p138) target = $region20
        $region19: #{tpu_custom_call.1} parent=11 // pred_region
          _
        $region20: #{tpu_custom_call.1} parent=11 // pred_fallthru
          _
      $region12: #{tpu_custom_call.1} parent=5 // pred_fallthru
        _
      %p141 = scmp.lt.s32.totalorder %s12, 2
      // Predicated region
      $region21: #{tpu_custom_call.1} parent=5 // pred_check
        %p142 = pneg %p141
      $region22: #{tpu_custom_call.1} parent=5 // pred_check_branch
        %144 = sbr.rel (%p142) target = $region24
      $region23: #{tpu_custom_call.1} parent=5 // pred_region
        // Predicated region
        $region25: #{tpu_custom_call.1} parent=23 // pred_check
          %p145 = pneg %p46
        $region26: #{tpu_custom_call.1} parent=23 // pred_check_branch
          %147 = sbr.rel (%p145) target = $region28
        $region27: #{tpu_custom_call.1} parent=23 // pred_region
          %s148 = smul.u32 16, %s19
          %p149 = scmp.lt.s32.totalorder %s148, 31
          %s150 = scalar_select %p149, %s148, 31
          %p151 = scmp.lt.s32.totalorder %s20, 0
          %s152 = scalar_select %p151, %s20, 0
          %s153 = sadd.s32 %s152, %s150
          %s154 = smul.addr %s153, 4
          %s155 = scalar_lea.vmem %s0, %s154
          %s156 = smul.u32 16, %s19
        $region28: #{tpu_custom_call.1} parent=23 // pred_fallthru
          _
      $region24: #{tpu_custom_call.1} parent=5 // pred_fallthru
        _
      %p157 = scmp.le.s32.totalorder 1, %s12
      %p158 = scmp.lt.s32.totalorder %s12, 3
      %p159 = pnand %p157, %p158
      %p160 = pneg %p159
      // Predicated region
      $region29: #{tpu_custom_call.1} parent=5 // pred_check
        _
      $region30: #{tpu_custom_call.1} parent=5 // pred_check_branch
        %162 = sbr.rel (%p159) target = $region32
      $region31: #{tpu_custom_call.1} parent=5 // pred_region
        %s163 = ssub.s32 %s12, 1
        %s164 = smul.u32 16, %s21
        %p165 = scmp.lt.s32.totalorder %s164, 31
        %s166 = scalar_select %p165, %s164, 31
        %p167 = scmp.lt.s32.totalorder %s22, 0
        %s168 = scalar_select %p167, %s22, 0
        %s169 = sadd.s32 %s168, %s166
        %s170 = smul.addr %s169, 4
        %s171 = scalar_lea.vmem %s0, %s170
        %p172 = pneg %p52
        %p173 = pneg %p49
        %p174 = pneg %p73
        %p175 = pneg %p70
        %p176 = pneg %p94
        %p177 = pneg %p91
        %p178 = pneg %p120
        %p179 = pneg %p117
        %s180 = sand.u32 %s107, 1
        %s181 = scalar_lea.sflag [#allocation4], %s180
        %s182 = sand.u32 %s107, 1
        %s183 = smul.addr %s182, 128
        %s184 = scalar_lea.vmem [#allocation3], %s183
        %s185 = smul.u32 16, %s21
        %p186 = scmp.lt.s32.totalorder %s185, 31
        %s187 = scalar_select %p186, %s185, 31
        %p188 = scmp.lt.s32.totalorder %s22, 0
        %s189 = scalar_select %p188, %s22, 0
        %s190 = sadd.s32 %s189, %s187
        %s191 = smul.addr %s190, 4
        %s192 = scalar_lea.vmem %s0, %s191
        %s193 = smul.u32 16, %s21
        %s194 = smul.u32 16, %s21
        %p196 = scmp.eq.s32.totalorder %s22, 0
        // Predicated region
        $region33: #{tpu_custom_call.1} parent=31 // pred_check
          %p197 = pneg %p196
        $region34: #{tpu_custom_call.1} parent=31 // pred_check_branch
          %199 = sbr.rel (%p197) target = $region36
        $region35: #{tpu_custom_call.1} parent=31 // pred_region
          %200 = vst [vmem:[#allocation2] sm:$0xff] 0.0
          %201 = vst [vmem:[#allocation2 + $0x8] sm:$0xff] 0.0
          %202 = vst [vmem:[#allocation2 + $0x10] sm:$0xff] 0.0
          %203 = vst [vmem:[#allocation2 + $0x18] sm:$0xff] 0.0
          %204 = vst [vmem:[#allocation2 + $0x20] sm:$0xff] 0.0
          %205 = vst [vmem:[#allocation2 + $0x28] sm:$0xff] 0.0
          %206 = vst [vmem:[#allocation2 + $0x30] sm:$0xff] 0.0
          %207 = vst [vmem:[#allocation2 + $0x38] sm:$0xff] 0.0
          %208 = vst [vmem:[#allocation2 + $0x40] sm:$0xff] 0.0
          %209 = vst [vmem:[#allocation2 + $0x48] sm:$0xff] 0.0
          %210 = vst [vmem:[#allocation2 + $0x50] sm:$0xff] 0.0
          %211 = vst [vmem:[#allocation2 + $0x58] sm:$0xff] 0.0
          %212 = vst [vmem:[#allocation2 + $0x60] sm:$0xff] 0.0
          %213 = vst [vmem:[#allocation2 + $0x68] sm:$0xff] 0.0
          %214 = vst [vmem:[#allocation2 + $0x70] sm:$0xff] 0.0
          %215 = vst [vmem:[#allocation2 + $0x78] sm:$0xff] 0.0
        $region36: #{tpu_custom_call.1} parent=31 // pred_fallthru
          _
        %v216 = vld [vmem:[#allocation2] sm:$0xff]
        %v217 = vld [vmem:[#allocation2 + $0x8] sm:$0xff]
        %v218 = vld [vmem:[#allocation2 + $0x10] sm:$0xff]
        %v219 = vld [vmem:[#allocation2 + $0x18] sm:$0xff]
        %v220 = vld [vmem:[#allocation2 + $0x20] sm:$0xff]
        %v221 = vld [vmem:[#allocation2 + $0x28] sm:$0xff]
        %v222 = vld [vmem:[#allocation2 + $0x30] sm:$0xff]
        %v223 = vld [vmem:[#allocation2 + $0x38] sm:$0xff]
        %v224 = vld [vmem:[#allocation2 + $0x40] sm:$0xff]
        %v225 = vld [vmem:[#allocation2 + $0x48] sm:$0xff]
        %v226 = vld [vmem:[#allocation2 + $0x50] sm:$0xff]
        %v227 = vld [vmem:[#allocation2 + $0x58] sm:$0xff]
        %v228 = vld [vmem:[#allocation2 + $0x60] sm:$0xff]
        %v229 = vld [vmem:[#allocation2 + $0x68] sm:$0xff]
        %v230 = vld [vmem:[#allocation2 + $0x70] sm:$0xff]
        %v231 = vld [vmem:[#allocation2 + $0x78] sm:$0xff]
        %v232 = vld [vmem:[%s192] sm:$0xf]
        %v233 = vld [vmem:[%s192 + $0x4] sm:$0xf]
        %v234 = vld [vmem:[%s192 + $0x8] sm:$0xf]
        %v235 = vld [vmem:[%s192 + $0xc] sm:$0xf]
        %v236 = vld [vmem:[%s192 + $0x10] sm:$0xf]
        %v237 = vld [vmem:[%s192 + $0x14] sm:$0xf]
        %v238 = vld [vmem:[%s192 + $0x18] sm:$0xf]
        %v239 = vld [vmem:[%s192 + $0x1c] sm:$0xf]
        %v240 = vld [vmem:[%s192 + $0x20] sm:$0xf]
        %v241 = vld [vmem:[%s192 + $0x24] sm:$0xf]
        %v242 = vld [vmem:[%s192 + $0x28] sm:$0xf]
        %v243 = vld [vmem:[%s192 + $0x2c] sm:$0xf]
        %v244 = vld [vmem:[%s192 + $0x30] sm:$0xf]
        %v245 = vld [vmem:[%s192 + $0x34] sm:$0xf]
        %v246 = vld [vmem:[%s192 + $0x38] sm:$0xf]
        %v247 = vld [vmem:[%s192 + $0x3c] sm:$0xf]
        %v248 = vld [vmem:[%s1] sm:$0xf]
        %v249 = vld [vmem:[%s1 + $0x4] sm:$0xf]
        %v250 = vld [vmem:[%s1 + $0x8] sm:$0xf]
        %v251 = vld [vmem:[%s1 + $0xc] sm:$0xf]
        %v268 = vunpack.c.l.b16 %v232
        %v269 = vunpack.c.l.b16 %v233
        %v270 = vunpack.c.l.b16 %v234
        %v271 = vunpack.c.l.b16 %v235
        %v272 = vunpack.c.l.b16 %v236
        %v273 = vunpack.c.l.b16 %v237
        %v274 = vunpack.c.l.b16 %v238
        %v275 = vunpack.c.l.b16 %v239
        %v276 = vunpack.c.l.b16 %v240
        %v277 = vunpack.c.l.b16 %v241
        %v278 = vunpack.c.l.b16 %v242
        %v279 = vunpack.c.l.b16 %v243
        %v280 = vunpack.c.l.b16 %v244
        %v281 = vunpack.c.l.b16 %v245
        %v282 = vunpack.c.l.b16 %v246
        %v283 = vunpack.c.l.b16 %v247
        %v284 = vpack.c.b16 %v269, %v268
        %v285 = vpack.c.b16 %v271, %v270
        %v286 = vpack.c.b16 %v273, %v272
        %v287 = vpack.c.b16 %v275, %v274
        %v288 = vpack.c.b16 %v277, %v276
        %v289 = vpack.c.b16 %v279, %v278
        %v290 = vpack.c.b16 %v281, %v280
        %v291 = vpack.c.b16 %v283, %v282
        %v296 = vunpack.c.l.b16 %v248
        %v297 = vunpack.c.l.b16 %v249
        %v298 = vunpack.c.l.b16 %v250
        %v299 = vunpack.c.l.b16 %v251
        %v300 = vpack.c.b16 %v297, %v296
        %v301 = vpack.c.b16 %v299, %v298
        %vm304 = vcmask 261120
        %v306 = vsel %vm304, %v284, 0
        %v309 = vsel %vm304, %v285, 0
        %v312 = vsel %vm304, %v286, 0
        %v315 = vsel %vm304, %v287, 0
        %v318 = vsel %vm304, %v288, 0
        %v321 = vsel %vm304, %v289, 0
        %v324 = vsel %vm304, %v290, 0
        %v327 = vsel %vm304, %v291, 0
        %329 = vmatpush.bf16.msra.mxu0 0
        %330 = vmatpush.bf16.msra.mxu0 0
        %331 = vmatpush.bf16.msra.mxu0 0
        %332 = vmatpush.bf16.msra.mxu0 0
        %333 = vmatpush.bf16.msra.mxu0 0
        %334 = vmatpush.bf16.msra.mxu0 0
        %335 = vmatpush.bf16.msra.mxu0 %v301
        %336 = vmatpush.bf16.msra.mxu0 %v300
        %337 = vmatmul.bf16.gmra.mxu0 %v306
        %v338 = vpop.f32.mrf.mxu0
        %v339 = vadd.f32 0.0, %v338
        %v340 = vpop.f32.mrf.mxu0
        %v341 = vadd.f32 0.0, %v340
        %342 = vmatmul.bf16.gmra.mxu0 %v309
        %v343 = vpop.f32.mrf.mxu0
        %v344 = vadd.f32 0.0, %v343
        %v345 = vpop.f32.mrf.mxu0
        %v346 = vadd.f32 0.0, %v345
        %347 = vmatmul.bf16.gmra.mxu0 %v312
        %v348 = vpop.f32.mrf.mxu0
        %v349 = vadd.f32 0.0, %v348
        %v350 = vpop.f32.mrf.mxu0
        %v351 = vadd.f32 0.0, %v350
        %352 = vmatmul.bf16.gmra.mxu0 %v315
        %v353 = vpop.f32.mrf.mxu0
        %v354 = vadd.f32 0.0, %v353
        %v355 = vpop.f32.mrf.mxu0
        %v356 = vadd.f32 0.0, %v355
        %357 = vmatmul.bf16.gmra.mxu0 %v318
        %v358 = vpop.f32.mrf.mxu0
        %v359 = vadd.f32 0.0, %v358
        %v360 = vpop.f32.mrf.mxu0
        %v361 = vadd.f32 0.0, %v360
        %362 = vmatmul.bf16.gmra.mxu0 %v321
        %v363 = vpop.f32.mrf.mxu0
        %v364 = vadd.f32 0.0, %v363
        %v365 = vpop.f32.mrf.mxu0
        %v366 = vadd.f32 0.0, %v365
        %367 = vmatmul.bf16.gmra.mxu0 %v324
        %v368 = vpop.f32.mrf.mxu0
        %v369 = vadd.f32 0.0, %v368
        %v370 = vpop.f32.mrf.mxu0
        %v371 = vadd.f32 0.0, %v370
        %372 = vmatmul.bf16.gmra.mxu0 %v327
        %v373 = vpop.f32.mrf.mxu0
        %v374 = vadd.f32 0.0, %v373
        %v375 = vpop.f32.mrf.mxu0
        %v376 = vadd.f32 0.0, %v375
        %377 = vdwg.mxu0
        %v378 = vadd.f32 %v216, %v339
        %v379 = vadd.f32 %v217, %v341
        %v380 = vadd.f32 %v218, %v344
        %v381 = vadd.f32 %v219, %v346
        %v382 = vadd.f32 %v220, %v349
        %v383 = vadd.f32 %v221, %v351
        %v384 = vadd.f32 %v222, %v354
        %v385 = vadd.f32 %v223, %v356
        %v386 = vadd.f32 %v224, %v359
        %v387 = vadd.f32 %v225, %v361
        %v388 = vadd.f32 %v226, %v364
        %v389 = vadd.f32 %v227, %v366
        %v390 = vadd.f32 %v228, %v369
        %v391 = vadd.f32 %v229, %v371
        %v392 = vadd.f32 %v230, %v374
        %v393 = vadd.f32 %v231, %v376
        %394 = vst [vmem:[#allocation2] sm:$0xff] %v378
        %395 = vst [vmem:[#allocation2 + $0x8] sm:$0xff] %v379
        %396 = vst [vmem:[#allocation2 + $0x10] sm:$0xff] %v380
        %397 = vst [vmem:[#allocation2 + $0x18] sm:$0xff] %v381
        %398 = vst [vmem:[#allocation2 + $0x20] sm:$0xff] %v382
        %399 = vst [vmem:[#allocation2 + $0x28] sm:$0xff] %v383
        %400 = vst [vmem:[#allocation2 + $0x30] sm:$0xff] %v384
        %401 = vst [vmem:[#allocation2 + $0x38] sm:$0xff] %v385
        %402 = vst [vmem:[#allocation2 + $0x40] sm:$0xff] %v386
        %403 = vst [vmem:[#allocation2 + $0x48] sm:$0xff] %v387
        %404 = vst [vmem:[#allocation2 + $0x50] sm:$0xff] %v388
        %405 = vst [vmem:[#allocation2 + $0x58] sm:$0xff] %v389
        %406 = vst [vmem:[#allocation2 + $0x60] sm:$0xff] %v390
        %407 = vst [vmem:[#allocation2 + $0x68] sm:$0xff] %v391
        %408 = vst [vmem:[#allocation2 + $0x70] sm:$0xff] %v392
        %409 = vst [vmem:[#allocation2 + $0x78] sm:$0xff] %v393
        // Predicated region
        $region37: #{tpu_custom_call.1} parent=31 // pred_check
          %p410 = pneg %p196
        $region38: #{tpu_custom_call.1} parent=31 // pred_check_branch
          %412 = sbr.rel (%p410) target = $region40
        $region39: #{tpu_custom_call.1} parent=31 // pred_region
          %v413 = vld [vmem:[#allocation2] sm:$0xff]
          %v414 = vld [vmem:[#allocation2 + $0x8] sm:$0xff]
          %v415 = vld [vmem:[#allocation2 + $0x10] sm:$0xff]
          %v416 = vld [vmem:[#allocation2 + $0x18] sm:$0xff]
          %v417 = vld [vmem:[#allocation2 + $0x20] sm:$0xff]
          %v418 = vld [vmem:[#allocation2 + $0x28] sm:$0xff]
          %v419 = vld [vmem:[#allocation2 + $0x30] sm:$0xff]
          %v420 = vld [vmem:[#allocation2 + $0x38] sm:$0xff]
          %v421 = vld [vmem:[#allocation2 + $0x40] sm:$0xff]
          %v422 = vld [vmem:[#allocation2 + $0x48] sm:$0xff]
          %v423 = vld [vmem:[#allocation2 + $0x50] sm:$0xff]
          %v424 = vld [vmem:[#allocation2 + $0x58] sm:$0xff]
          %v425 = vld [vmem:[#allocation2 + $0x60] sm:$0xff]
          %v426 = vld [vmem:[#allocation2 + $0x68] sm:$0xff]
          %v427 = vld [vmem:[#allocation2 + $0x70] sm:$0xff]
          %v428 = vld [vmem:[#allocation2 + $0x78] sm:$0xff]
          %v429 = vld [vmem:[%s2] sm:$0x1]
          %v431 = vperm.slane %v429, 0
          %v433 = vadd.f32 %v413, %v431
          %v434 = vadd.f32 %v414, %v431
          %v435 = vadd.f32 %v415, %v431
          %v436 = vadd.f32 %v416, %v431
          %v437 = vadd.f32 %v417, %v431
          %v438 = vadd.f32 %v418, %v431
          %v439 = vadd.f32 %v419, %v431
          %v440 = vadd.f32 %v420, %v431
          %v441 = vadd.f32 %v421, %v431
          %v442 = vadd.f32 %v422, %v431
          %v443 = vadd.f32 %v423, %v431
          %v444 = vadd.f32 %v424, %v431
          %v445 = vadd.f32 %v425, %v431
          %v446 = vadd.f32 %v426, %v431
          %v447 = vadd.f32 %v427, %v431
          %v448 = vadd.f32 %v428, %v431
          %449 = vmax.xlane.f32.xlu0 %v433
          %v450 = vpop.xlane.xlu0 %449
          %451 = vmax.xlane.f32.xlu0 %v434
          %v452 = vpop.xlane.xlu0 %451
          %453 = vmax.xlane.f32.xlu0 %v435
          %v454 = vpop.xlane.xlu0 %453
          %455 = vmax.xlane.f32.xlu0 %v436
          %v456 = vpop.xlane.xlu0 %455
          %457 = vmax.xlane.f32.xlu0 %v437
          %v458 = vpop.xlane.xlu0 %457
          %459 = vmax.xlane.f32.xlu0 %v438
          %v460 = vpop.xlane.xlu0 %459
          %461 = vmax.xlane.f32.xlu0 %v439
          %v462 = vpop.xlane.xlu0 %461
          %463 = vmax.xlane.f32.xlu0 %v440
          %v464 = vpop.xlane.xlu0 %463
          %465 = vmax.xlane.f32.xlu0 %v441
          %v466 = vpop.xlane.xlu0 %465
          %467 = vmax.xlane.f32.xlu0 %v442
          %v468 = vpop.xlane.xlu0 %467
          %469 = vmax.xlane.f32.xlu0 %v443
          %v470 = vpop.xlane.xlu0 %469
          %471 = vmax.xlane.f32.xlu0 %v444
          %v472 = vpop.xlane.xlu0 %471
          %473 = vmax.xlane.f32.xlu0 %v445
          %v474 = vpop.xlane.xlu0 %473
          %475 = vmax.xlane.f32.xlu0 %v446
          %v476 = vpop.xlane.xlu0 %475
          %477 = vmax.xlane.f32.xlu0 %v447
          %v478 = vpop.xlane.xlu0 %477
          %479 = vmax.xlane.f32.xlu0 %v448
          %v480 = vpop.xlane.xlu0 %479
          %v481 = vsub.f32 %v433, %v450
          %v482 = vsub.f32 %v434, %v452
          %v483 = vsub.f32 %v435, %v454
          %v484 = vsub.f32 %v436, %v456
          %v485 = vsub.f32 %v437, %v458
          %v486 = vsub.f32 %v438, %v460
          %v487 = vsub.f32 %v439, %v462
          %v488 = vsub.f32 %v440, %v464
          %v489 = vsub.f32 %v441, %v466
          %v490 = vsub.f32 %v442, %v468
          %v491 = vsub.f32 %v443, %v470
          %v492 = vsub.f32 %v444, %v472
          %v493 = vsub.f32 %v445, %v474
          %v494 = vsub.f32 %v446, %v476
          %v495 = vsub.f32 %v447, %v478
          %v496 = vsub.f32 %v448, %v480
          %v497 = vmul.f32 %v481, 1.442695
          %v498 = vpow.pop %v497
          %v499 = vmul.f32 %v482, 1.442695
          %v500 = vpow.pop %v499
          %v501 = vmul.f32 %v483, 1.442695
          %v502 = vpow.pop %v501
          %v503 = vmul.f32 %v484, 1.442695
          %v504 = vpow.pop %v503
          %v505 = vmul.f32 %v485, 1.442695
          %v506 = vpow.pop %v505
          %v507 = vmul.f32 %v486, 1.442695
          %v508 = vpow.pop %v507
          %v509 = vmul.f32 %v487, 1.442695
          %v510 = vpow.pop %v509
          %v511 = vmul.f32 %v488, 1.442695
          %v512 = vpow.pop %v511
          %v513 = vmul.f32 %v489, 1.442695
          %v514 = vpow.pop %v513
          %v515 = vmul.f32 %v490, 1.442695
          %v516 = vpow.pop %v515
          %v517 = vmul.f32 %v491, 1.442695
          %v518 = vpow.pop %v517
          %v519 = vmul.f32 %v492, 1.442695
          %v520 = vpow.pop %v519
          %v521 = vmul.f32 %v493, 1.442695
          %v522 = vpow.pop %v521
          %v523 = vmul.f32 %v494, 1.442695
          %v524 = vpow.pop %v523
          %v525 = vmul.f32 %v495, 1.442695
          %v526 = vpow.pop %v525
          %v527 = vmul.f32 %v496, 1.442695
          %v528 = vpow.pop %v527
          %529 = vadd.xlane.f32.xlu0 %v498
          %v530 = vpop.xlane.xlu0 %529
          %531 = vadd.xlane.f32.xlu0 %v500
          %v532 = vpop.xlane.xlu0 %531
          %533 = vadd.xlane.f32.xlu0 %v502
          %v534 = vpop.xlane.xlu0 %533
          %535 = vadd.xlane.f32.xlu0 %v504
          %v536 = vpop.xlane.xlu0 %535
          %537 = vadd.xlane.f32.xlu0 %v506
          %v538 = vpop.xlane.xlu0 %537
          %539 = vadd.xlane.f32.xlu0 %v508
          %v540 = vpop.xlane.xlu0 %539
          %541 = vadd.xlane.f32.xlu0 %v510
          %v542 = vpop.xlane.xlu0 %541
          %543 = vadd.xlane.f32.xlu0 %v512
          %v544 = vpop.xlane.xlu0 %543
          %545 = vadd.xlane.f32.xlu0 %v514
          %v546 = vpop.xlane.xlu0 %545
          %547 = vadd.xlane.f32.xlu0 %v516
          %v548 = vpop.xlane.xlu0 %547
          %549 = vadd.xlane.f32.xlu0 %v518
          %v550 = vpop.xlane.xlu0 %549
          %551 = vadd.xlane.f32.xlu0 %v520
          %v552 = vpop.xlane.xlu0 %551
          %553 = vadd.xlane.f32.xlu0 %v522
          %v554 = vpop.xlane.xlu0 %553
          %555 = vadd.xlane.f32.xlu0 %v524
          %v556 = vpop.xlane.xlu0 %555
          %557 = vadd.xlane.f32.xlu0 %v526
          %v558 = vpop.xlane.xlu0 %557
          %559 = vadd.xlane.f32.xlu0 %v528
          %v560 = vpop.xlane.xlu0 %559
          %v561 = vrcp.pop %v530
          %v562 = vmul.f32 %v530, %v561
          %v563 = vsub.f32 1.0, %v562
          %v564 = vmul.f32 %v561, %v563
          %v565 = vadd.f32 %v561, %v564
          %vm566 = vweird.f32 %v530
          %vm567 = vweird.f32 %v561
          %vm568 = vmor %vm566, %vm567
          %v569 = vsel %vm568, %v561, %v565
          %v570 = vand.u32 2147483647, %v530
          %vm571 = vcmp.eq.f32.partialorder %v570, 8.507059e+37
          %v572 = vand.u32 %v530, 2147483648
          %v573 = vor.u32 1.1754944e-38, %v572
          %v574 = vsel %vm571, %v573, %v569
          %v575 = vmul.f32 %v498, %v574
          %v576 = vrcp.pop %v532
          %v577 = vmul.f32 %v532, %v576
          %v578 = vsub.f32 1.0, %v577
          %v579 = vmul.f32 %v576, %v578
          %v580 = vadd.f32 %v576, %v579
          %vm581 = vweird.f32 %v532
          %vm582 = vweird.f32 %v576
          %vm583 = vmor %vm581, %vm582
          %v584 = vsel %vm583, %v576, %v580
          %v585 = vand.u32 2147483647, %v532
          %vm586 = vcmp.eq.f32.partialorder %v585, 8.507059e+37
          %v587 = vand.u32 %v532, 2147483648
          %v588 = vor.u32 1.1754944e-38, %v587
          %v589 = vsel %vm586, %v588, %v584
          %v590 = vmul.f32 %v500, %v589
          %v591 = vrcp.pop %v534
          %v592 = vmul.f32 %v534, %v591
          %v593 = vsub.f32 1.0, %v592
          %v594 = vmul.f32 %v591, %v593
          %v595 = vadd.f32 %v591, %v594
          %vm596 = vweird.f32 %v534
          %vm597 = vweird.f32 %v591
          %vm598 = vmor %vm596, %vm597
          %v599 = vsel %vm598, %v591, %v595
          %v600 = vand.u32 2147483647, %v534
          %vm601 = vcmp.eq.f32.partialorder %v600, 8.507059e+37
          %v602 = vand.u32 %v534, 2147483648
          %v603 = vor.u32 1.1754944e-38, %v602
          %v604 = vsel %vm601, %v603, %v599
          %v605 = vmul.f32 %v502, %v604
          %v606 = vrcp.pop %v536
          %v607 = vmul.f32 %v536, %v606
          %v608 = vsub.f32 1.0, %v607
          %v609 = vmul.f32 %v606, %v608
          %v610 = vadd.f32 %v606, %v609
          %vm611 = vweird.f32 %v536
          %vm612 = vweird.f32 %v606
          %vm613 = vmor %vm611, %vm612
          %v614 = vsel %vm613, %v606, %v610
          %v615 = vand.u32 2147483647, %v536
          %vm616 = vcmp.eq.f32.partialorder %v615, 8.507059e+37
          %v617 = vand.u32 %v536, 2147483648
          %v618 = vor.u32 1.1754944e-38, %v617
          %v619 = vsel %vm616, %v618, %v614
          %v620 = vmul.f32 %v504, %v619
          %v621 = vrcp.pop %v538
          %v622 = vmul.f32 %v538, %v621
          %v623 = vsub.f32 1.0, %v622
          %v624 = vmul.f32 %v621, %v623
          %v625 = vadd.f32 %v621, %v624
          %vm626 = vweird.f32 %v538
          %vm627 = vweird.f32 %v621
          %vm628 = vmor %vm626, %vm627
          %v629 = vsel %vm628, %v621, %v625
          %v630 = vand.u32 2147483647, %v538
          %vm631 = vcmp.eq.f32.partialorder %v630, 8.507059e+37
          %v632 = vand.u32 %v538, 2147483648
          %v633 = vor.u32 1.1754944e-38, %v632
          %v634 = vsel %vm631, %v633, %v629
          %v635 = vmul.f32 %v506, %v634
          %v636 = vrcp.pop %v540
          %v637 = vmul.f32 %v540, %v636
          %v638 = vsub.f32 1.0, %v637
          %v639 = vmul.f32 %v636, %v638
          %v640 = vadd.f32 %v636, %v639
          %vm641 = vweird.f32 %v540
          %vm642 = vweird.f32 %v636
          %vm643 = vmor %vm641, %vm642
          %v644 = vsel %vm643, %v636, %v640
          %v645 = vand.u32 2147483647, %v540
          %vm646 = vcmp.eq.f32.partialorder %v645, 8.507059e+37
          %v647 = vand.u32 %v540, 2147483648
          %v648 = vor.u32 1.1754944e-38, %v647
          %v649 = vsel %vm646, %v648, %v644
          %v650 = vmul.f32 %v508, %v649
          %v651 = vrcp.pop %v542
          %v652 = vmul.f32 %v542, %v651
          %v653 = vsub.f32 1.0, %v652
          %v654 = vmul.f32 %v651, %v653
          %v655 = vadd.f32 %v651, %v654
          %vm656 = vweird.f32 %v542
          %vm657 = vweird.f32 %v651
          %vm658 = vmor %vm656, %vm657
          %v659 = vsel %vm658, %v651, %v655
          %v660 = vand.u32 2147483647, %v542
          %vm661 = vcmp.eq.f32.partialorder %v660, 8.507059e+37
          %v662 = vand.u32 %v542, 2147483648
          %v663 = vor.u32 1.1754944e-38, %v662
          %v664 = vsel %vm661, %v663, %v659
          %v665 = vmul.f32 %v510, %v664
          %v666 = vrcp.pop %v544
          %v667 = vmul.f32 %v544, %v666
          %v668 = vsub.f32 1.0, %v667
          %v669 = vmul.f32 %v666, %v668
          %v670 = vadd.f32 %v666, %v669
          %vm671 = vweird.f32 %v544
          %vm672 = vweird.f32 %v666
          %vm673 = vmor %vm671, %vm672
          %v674 = vsel %vm673, %v666, %v670
          %v675 = vand.u32 2147483647, %v544
          %vm676 = vcmp.eq.f32.partialorder %v675, 8.507059e+37
          %v677 = vand.u32 %v544, 2147483648
          %v678 = vor.u32 1.1754944e-38, %v677
          %v679 = vsel %vm676, %v678, %v674
          %v680 = vmul.f32 %v512, %v679
          %v681 = vrcp.pop %v546
          %v682 = vmul.f32 %v546, %v681
          %v683 = vsub.f32 1.0, %v682
          %v684 = vmul.f32 %v681, %v683
          %v685 = vadd.f32 %v681, %v684
          %vm686 = vweird.f32 %v546
          %vm687 = vweird.f32 %v681
          %vm688 = vmor %vm686, %vm687
          %v689 = vsel %vm688, %v681, %v685
          %v690 = vand.u32 2147483647, %v546
          %vm691 = vcmp.eq.f32.partialorder %v690, 8.507059e+37
          %v692 = vand.u32 %v546, 2147483648
          %v693 = vor.u32 1.1754944e-38, %v692
          %v694 = vsel %vm691, %v693, %v689
          %v695 = vmul.f32 %v514, %v694
          %v696 = vrcp.pop %v548
          %v697 = vmul.f32 %v548, %v696
          %v698 = vsub.f32 1.0, %v697
          %v699 = vmul.f32 %v696, %v698
          %v700 = vadd.f32 %v696, %v699
          %vm701 = vweird.f32 %v548
          %vm702 = vweird.f32 %v696
          %vm703 = vmor %vm701, %vm702
          %v704 = vsel %vm703, %v696, %v700
          %v705 = vand.u32 2147483647, %v548
          %vm706 = vcmp.eq.f32.partialorder %v705, 8.507059e+37
          %v707 = vand.u32 %v548, 2147483648
          %v708 = vor.u32 1.1754944e-38, %v707
          %v709 = vsel %vm706, %v708, %v704
          %v710 = vmul.f32 %v516, %v709
          %v711 = vrcp.pop %v550
          %v712 = vmul.f32 %v550, %v711
          %v713 = vsub.f32 1.0, %v712
          %v714 = vmul.f32 %v711, %v713
          %v715 = vadd.f32 %v711, %v714
          %vm716 = vweird.f32 %v550
          %vm717 = vweird.f32 %v711
          %vm718 = vmor %vm716, %vm717
          %v719 = vsel %vm718, %v711, %v715
          %v720 = vand.u32 2147483647, %v550
          %vm721 = vcmp.eq.f32.partialorder %v720, 8.507059e+37
          %v722 = vand.u32 %v550, 2147483648
          %v723 = vor.u32 1.1754944e-38, %v722
          %v724 = vsel %vm721, %v723, %v719
          %v725 = vmul.f32 %v518, %v724
          %v726 = vrcp.pop %v552
          %v727 = vmul.f32 %v552, %v726
          %v728 = vsub.f32 1.0, %v727
          %v729 = vmul.f32 %v726, %v728
          %v730 = vadd.f32 %v726, %v729
          %vm731 = vweird.f32 %v552
          %vm732 = vweird.f32 %v726
          %vm733 = vmor %vm731, %vm732
          %v734 = vsel %vm733, %v726, %v730
          %v735 = vand.u32 2147483647, %v552
          %vm736 = vcmp.eq.f32.partialorder %v735, 8.507059e+37
          %v737 = vand.u32 %v552, 2147483648
          %v738 = vor.u32 1.1754944e-38, %v737
          %v739 = vsel %vm736, %v738, %v734
          %v740 = vmul.f32 %v520, %v739
          %v741 = vrcp.pop %v554
          %v742 = vmul.f32 %v554, %v741
          %v743 = vsub.f32 1.0, %v742
          %v744 = vmul.f32 %v741, %v743
          %v745 = vadd.f32 %v741, %v744
          %vm746 = vweird.f32 %v554
          %vm747 = vweird.f32 %v741
          %vm748 = vmor %vm746, %vm747
          %v749 = vsel %vm748, %v741, %v745
          %v750 = vand.u32 2147483647, %v554
          %vm751 = vcmp.eq.f32.partialorder %v750, 8.507059e+37
          %v752 = vand.u32 %v554, 2147483648
          %v753 = vor.u32 1.1754944e-38, %v752
          %v754 = vsel %vm751, %v753, %v749
          %v755 = vmul.f32 %v522, %v754
          %v756 = vrcp.pop %v556
          %v757 = vmul.f32 %v556, %v756
          %v758 = vsub.f32 1.0, %v757
          %v759 = vmul.f32 %v756, %v758
          %v760 = vadd.f32 %v756, %v759
          %vm761 = vweird.f32 %v556
          %vm762 = vweird.f32 %v756
          %vm763 = vmor %vm761, %vm762
          %v764 = vsel %vm763, %v756, %v760
          %v765 = vand.u32 2147483647, %v556
          %vm766 = vcmp.eq.f32.partialorder %v765, 8.507059e+37
          %v767 = vand.u32 %v556, 2147483648
          %v768 = vor.u32 1.1754944e-38, %v767
          %v769 = vsel %vm766, %v768, %v764
          %v770 = vmul.f32 %v524, %v769
          %v771 = vrcp.pop %v558
          %v772 = vmul.f32 %v558, %v771
          %v773 = vsub.f32 1.0, %v772
          %v774 = vmul.f32 %v771, %v773
          %v775 = vadd.f32 %v771, %v774
          %vm776 = vweird.f32 %v558
          %vm777 = vweird.f32 %v771
          %vm778 = vmor %vm776, %vm777
          %v779 = vsel %vm778, %v771, %v775
          %v780 = vand.u32 2147483647, %v558
          %vm781 = vcmp.eq.f32.partialorder %v780, 8.507059e+37
          %v782 = vand.u32 %v558, 2147483648
          %v783 = vor.u32 1.1754944e-38, %v782
          %v784 = vsel %vm781, %v783, %v779
          %v785 = vmul.f32 %v526, %v784
          %v786 = vrcp.pop %v560
          %v787 = vmul.f32 %v560, %v786
          %v788 = vsub.f32 1.0, %v787
          %v789 = vmul.f32 %v786, %v788
          %v790 = vadd.f32 %v786, %v789
          %vm791 = vweird.f32 %v560
          %vm792 = vweird.f32 %v786
          %vm793 = vmor %vm791, %vm792
          %v794 = vsel %vm793, %v786, %v790
          %v795 = vand.u32 2147483647, %v560
          %vm796 = vcmp.eq.f32.partialorder %v795, 8.507059e+37
          %v797 = vand.u32 %v560, 2147483648
          %v798 = vor.u32 1.1754944e-38, %v797
          %v799 = vsel %vm796, %v798, %v794
          %v800 = vmul.f32 %v528, %v799
          %801 = vst [vmem:[%s184] sm:$0xff] %v575
          %802 = vst [vmem:[%s184 + $0x8] sm:$0xff] %v590
          %803 = vst [vmem:[%s184 + $0x10] sm:$0xff] %v605
          %804 = vst [vmem:[%s184 + $0x18] sm:$0xff] %v620
          %805 = vst [vmem:[%s184 + $0x20] sm:$0xff] %v635
          %806 = vst [vmem:[%s184 + $0x28] sm:$0xff] %v650
          %807 = vst [vmem:[%s184 + $0x30] sm:$0xff] %v665
          %808 = vst [vmem:[%s184 + $0x38] sm:$0xff] %v680
          %809 = vst [vmem:[%s184 + $0x40] sm:$0xff] %v695
          %810 = vst [vmem:[%s184 + $0x48] sm:$0xff] %v710
          %811 = vst [vmem:[%s184 + $0x50] sm:$0xff] %v725
          %812 = vst [vmem:[%s184 + $0x58] sm:$0xff] %v740
          %813 = vst [vmem:[%s184 + $0x60] sm:$0xff] %v755
          %814 = vst [vmem:[%s184 + $0x68] sm:$0xff] %v770
          %815 = vst [vmem:[%s184 + $0x70] sm:$0xff] %v785
          %816 = vst [vmem:[%s184 + $0x78] sm:$0xff] %v800
        $region40: #{tpu_custom_call.1} parent=31 // pred_fallthru
          _
        %s817 = sand.u32 %s107, 1
        %s818 = scalar_lea.sflag [#allocation4], %s817
        %s819 = sand.u32 %s107, 1
        %s820 = smul.addr %s819, 128
        %s821 = scalar_lea.vmem [#allocation3], %s820
        // Predicated region
        $region41: #{tpu_custom_call.1} parent=31 // pred_check
          %p822 = pneg %p117
        $region42: #{tpu_custom_call.1} parent=31 // pred_check_branch
          %824 = sbr.rel (%p822) target = $region44
        $region43: #{tpu_custom_call.1} parent=31 // pred_region
          %s825 = smul.u32 16, %s21
          %827 = vsyncadd %s818, 0
          %s828 = smul.addr %s825, 8
          %s829 = scalar_lea.hbm %s3, %s828
          %s830 = sshll.u32 %s821, 4
          %s831 = int_to_ptr.vmem [resolvable:$true] %s830
          %s832 = sshll.u32 %s829, 4
          %s833 = int_to_ptr.hbm [resolvable:$true] %s832
          %838 = dma.vmem_to_hbm [thread:$0]  %s831, 2048, %s833, %s818, 128, 128, 8
        $region44: #{tpu_custom_call.1} parent=31 // pred_fallthru
          _
      $region32: #{tpu_custom_call.1} parent=5 // pred_fallthru
        _
      %p839 = scmp.le.s32.totalorder 2, %s12
      // Predicated region
      $region45: #{tpu_custom_call.1} parent=5 // pred_check
        %p840 = pneg %p839
      $region46: #{tpu_custom_call.1} parent=5 // pred_check_branch
        %842 = sbr.rel (%p840) target = $region48
      $region47: #{tpu_custom_call.1} parent=5 // pred_region
        %s843 = ssub.s32 %s12, 2
        // Predicated region
        $region49: #{tpu_custom_call.1} parent=47 // pred_check
          %p844 = pneg %p123
        $region50: #{tpu_custom_call.1} parent=47 // pred_check_branch
          %846 = sbr.rel (%p844) target = $region52
        $region51: #{tpu_custom_call.1} parent=47 // pred_region
          %s847 = sand.u32 %s108, 1
          %s848 = scalar_lea.sflag [#allocation4], %s847
          %s849 = sand.u32 %s108, 1
          %s850 = smul.addr %s849, 128
          %s851 = scalar_lea.vmem [#allocation3], %s850
          %853 = dma.done %s848, 2048
        $region52: #{tpu_custom_call.1} parent=47 // pred_fallthru
          _
      $region48: #{tpu_custom_call.1} parent=5 // pred_fallthru
        _
    $region6: #{tpu_custom_call.1} parent=1 // loop_footer
      %s16 = sadd.s32 1, %s12
    $region7: #{tpu_custom_call.1} parent=1 // loop_footer_branch
      %11 = sbr.rel target = $region3
    $region8: #{tpu_custom_call.1} parent=1 // loop_exit
      _
    %854 = vsyncpa [#allocation4], 1
    %s855 = scalar_lea.sflag [#allocation4], 1
    %856 = vsyncpa %s855, 1

</llo_original>
